<compile_context>
chip_gen: v6e
topology: v6e:2x2x1
jax: 0.10.0
libtpu: 0.0.40
codegen_flags: <defaults>
</compile_context>

<pallas_src>
import functools

import jax
import jax.numpy as jnp
from jax.experimental import pallas as pl
from jax.experimental.pallas import tpu as pltpu

_BN_EPS = 1e-5


def _round_up(x, m):
    return (x + m - 1) // m * m


# ----------------------------------------------------------------------------
# Fused ConvBlock kernel: grid = (sweep, image)
#   sweep 0 : 3x3 conv (9 shift-taps, bf16 MXU, f32 acc) -> y_scr, per-channel sum
#   boundary: centered batch mean/variance -> BN scale/shift
#   sweep 1 : normalize + affine + ReLU, written lane-dense to HBM
# ----------------------------------------------------------------------------
def _fused_conv_bn_relu_kernel(x_ref, w_ref, m_ref, g_ref, b_ref, o_ref,
                               y_scr, sum_scr, scale_scr, shift_scr,
                               *, W, n_imgs, inv_count):
    Co, HW = o_ref.shape
    P = W + 1                                   # flattened halo width
    sweep = pl.program_id(0)
    n = pl.program_id(1)

    # ---------------- sweep 0: conv + per-channel sums ----------------------
    @pl.when(sweep == 0)
    def _conv_pass():
        @pl.when(n == 0)
        def _init():
            sum_scr[...] = jnp.zeros_like(sum_scr)

        # dx edge masks (resident, f32): row 0 zeroes w==0, row 1 zeroes w==W-1.
        m_left = m_ref[0:1, :]
        m_right = m_ref[1:2, :]

        acc = jnp.zeros((Co, HW), jnp.float32)
        k = 0
        for dy in (-1, 0, 1):
            for dx in (-1, 0, 1):
                off = P + dy * W + dx                       # static offset >= 0
                tap = x_ref[:, off:off + HW]                # (Cin, HW) bf16
                contrib = jnp.dot(w_ref[k], tap,            # (Co, HW) f32 on MXU
                                  preferred_element_type=jnp.float32)
                # Zero the contributions that wrapped across a row boundary.
                if dx == -1:
                    contrib = contrib * m_left
                elif dx == 1:
                    contrib = contrib * m_right
                acc = acc + contrib
                k += 1

        y_scr[n] = acc                                      # stays in VMEM
        sum_scr[...] += jnp.sum(acc, axis=1, keepdims=True)

    # -------- sweep boundary: centered (two-pass) BatchNorm statistics ------
    @pl.when((sweep == 1) & (n == 0))
    def _finalize_stats():
        mean = sum_scr[...] * inv_count                     # (Co, 1)

        def body(i, v):
            d = y_scr[i] - mean
            return v + jnp.sum(d * d, axis=1, keepdims=True)

        var = jax.lax.fori_loop(0, n_imgs, body,
                                jnp.zeros_like(mean)) * inv_count  # biased var
        scale = g_ref[...] * jax.lax.rsqrt(var + _BN_EPS)
        scale_scr[...] = scale
        shift_scr[...] = b_ref[...] - mean * scale

    # ---------------- sweep 1: normalize + affine + ReLU --------------------
    @pl.when(sweep == 1)
    def _norm_pass():
        o_ref[...] = jnp.maximum(
            y_scr[n] * scale_scr[...] + shift_scr[...], 0.0)


# ----------------------------------------------------------------------------
# ConvBlock wrapper: x (N, Cin, H, W) f32 -> (N, Cout, H, W) f32
# ----------------------------------------------------------------------------
def _conv_bn_relu_layer(x, w_hwio, gamma, beta):
    N, Cin, H, W = x.shape
    Cout = w_hwio.shape[-1]
    HW = H * W
    P = W + 1
    Lp = HW + 2 * P                 # flattened spatial + halo (tiny, not 9x)
    Co = _round_up(Cout, 8)

    # Layout glue (cheap XLA producer): flatten spatial, add flattened zero
    # halo, cast to bf16 (MXU operand).  The halo absorbs all dy out-of-bounds
    # taps; dx wrap-around is handled by the in-kernel edge mask.
    xf = jnp.pad(x.reshape(N, Cin, HW),
                 ((0, 0), (0, 0), (P, P))).astype(jnp.bfloat16)

    # Weights -> (9, Co, Cin) bf16, tap index k = (dy+1)*3 + (dx+1).
    wk = jnp.transpose(w_hwio, (0, 1, 3, 2)).reshape(9, Cout, Cin)
    wk = jnp.pad(wk, ((0, 0), (0, Co - Cout), (0, 0))).astype(jnp.bfloat16)

    # dx edge masks on the flattened spatial axis.
    col = jnp.arange(HW, dtype=jnp.int32) % W
    edge = jnp.stack([(col != 0), (col != W - 1)]).astype(jnp.float32)  # (2, HW)

    g = jnp.pad(gamma.reshape(Cout, 1), ((0, Co - Cout), (0, 0)))
    b = jnp.pad(beta.reshape(Cout, 1), ((0, Co - Cout), (0, 0)))

    # VMEM budget (review: re-derive against v5e 16 MiB / v7x 64 MiB scopes).
    vmem_need = (
        N * Co * HW * 4              # grid-resident y scratch
        + 2 * Cin * Lp * 2           # double-buffered activation blocks (bf16)
        + 2 * Co * HW * 4            # double-buffered output blocks (f32)
        + 9 * Co * max(Cin, 8) * 2   # resident weights (bf16)
        + 2 * max(HW, 128) * 4       # resident edge masks
        + 6 * 8 * 128 * 4            # gamma/beta + stat scratches (padded tiles)
    )
    vmem_limit = int(min(48 * 1024 * 1024, max(16 * 1024 * 1024, 2 * vmem_need)))

    grid = (2, N)  # (sweep, image); both carry scratch state -> "arbitrary"

    out = pl.pallas_call(
        functools.partial(_fused_conv_bn_relu_kernel,
                          W=W, n_imgs=N, inv_count=1.0 / (N * HW)),
        grid=grid,
        in_specs=[
            # activation: image n in sweep 0; parked on the last block in
            # sweep 1 (no re-fetch, it is unused there).
            pl.BlockSpec((None, Cin, Lp),
                         lambda s, n: (s * (N - 1) + (1 - s) * n, 0, 0)),
            pl.BlockSpec((9, Co, Cin), lambda s, n: (0, 0, 0)),   # weights
            pl.BlockSpec((2, HW), lambda s, n: (0, 0)),           # edge masks
            pl.BlockSpec((Co, 1), lambda s, n: (0, 0)),           # gamma
            pl.BlockSpec((Co, 1), lambda s, n: (0, 0)),           # beta
        ],
        # Output block stays parked on image 0 during sweep 0 (never written,
        # never flushed) and follows n during sweep 1 -> each block is flushed
        # exactly once, right after its normalize step.
        out_specs=pl.BlockSpec((None, Co, HW), lambda s, n: (s * n, 0, 0)),
        out_shape=jax.ShapeDtypeStruct((N, Co, HW), jnp.float32),
        scratch_shapes=[
            pltpu.VMEM((N, Co, HW), jnp.float32),   # y (conv output), resident
            pltpu.VMEM((Co, 1), jnp.float32),       # per-channel sum
            pltpu.VMEM((Co, 1), jnp.float32),       # BN scale
            pltpu.VMEM((Co, 1), jnp.float32),       # BN shift
        ],
        compiler_params=pltpu.CompilerParams(
            dimension_semantics=("arbitrary", "arbitrary"),
            vmem_limit_bytes=vmem_limit),
    )(xf, wk, edge, g, b)

    return out[:, :Cout, :].reshape(N, Cout, H, W)


def down_block_forward(x_nchw, params):
    """_DownBlock.forward: MaxPool2d(2) then n_convs ConvBlocks."""
    N, C, H, W = x_nchw.shape
    # 2x2 max-pool as a small XLA reduce; it fuses into the producer of the
    # first conv's flattened/padded bf16 input (1/4-sized data, no own kernel).
    x = x_nchw.reshape(N, C, H // 2, 2, W // 2, 2).max(axis=(3, 5))
    for p in params:
        # conv bias p["b"] intentionally skipped: cancelled by train-mode BN.
        x = _conv_bn_relu_layer(x, p["w"], p["gamma"], p["beta"])
    return x


# ----------------------------------------------------------------------------
# Pure-JAX reference (f32 everywhere, includes the conv bias, as PyTorch does)
# ----------------------------------------------------------------------------
def _reference(x_nchw, params):
    x = jnp.transpose(x_nchw, (0, 2, 3, 1))
    N, H, W, C = x.shape
    x = x.reshape(N, H // 2, 2, W // 2, 2, C).max(axis=(2, 4))
    for p in params:
        y = jax.lax.conv_general_dilated(
            x, p["w"], window_strides=(1, 1), padding="SAME",
            dimension_numbers=("NHWC", "HWIO", "NHWC"))
        y = y + p["b"]
        mean = jnp.mean(y, axis=(0, 1, 2), keepdims=True)
        var = jnp.mean((y - mean) ** 2, axis=(0, 1, 2), keepdims=True)
        y = (y - mean) * jax.lax.rsqrt(var + _BN_EPS)
        y = y * p["gamma"] + p["beta"]
        x = jnp.maximum(y, 0.0)
    return jnp.transpose(x, (0, 3, 1, 2))


# ----------------------------------------------------------------------------
# Parameter construction (deterministic, synthetic)
# ----------------------------------------------------------------------------
def make_params(key, in_channels, out_channels, n_convs=2):
    params = []
    cin = in_channels
    for _ in range(n_convs):
        key, kw, kb = jax.random.split(key, 3)
        params.append(dict(
            w=0.1 * jax.random.normal(kw, (3, 3, cin, out_channels), jnp.float32),
            b=0.1 * jax.random.normal(kb, (out_channels,), jnp.float32),
            gamma=jnp.ones((out_channels,), jnp.float32),
            beta=jnp.zeros((out_channels,), jnp.float32),
        ))
        cin = out_channels
    return params


if __name__ == "__main__":
    key = jax.random.PRNGKey(0)
    kx, kp = jax.random.split(key)

    N, Cin, Hgt, Wid = 2, 4, 16, 16
    Cout = 8
    x = jax.random.normal(kx, (N, Cin, Hgt, Wid), jnp.float32)
    params = make_params(kp, Cin, Cout, n_convs=2)

    out = jax.block_until_ready(jax.jit(down_block_forward)(x, params))
    assert out.shape == (N, Cout, Hgt // 2, Wid // 2), out.shape

    ref = jax.block_until_ready(_reference(x, params))
    # Tolerance reflects the intentional bf16 MXU operands (f32 reference).
    err = float(jnp.max(jnp.abs(out - ref)))
    assert jnp.allclose(out, ref, atol=5e-2, rtol=5e-2), err

    print("KERNEL_OK")
</pallas_src>

<mosaic_0001>
module attributes {stable_mosaic.version = 11 : i64} {
  func.func @_fused_conv_bn_relu_kernel(%arg0: i32, %arg1: i32, %arg2: memref<1x4x82xbf16, #tpu.memory_space<vmem>>, %arg3: memref<9x8x4xbf16, #tpu.memory_space<vmem>>, %arg4: memref<2x64xf32, #tpu.memory_space<vmem>>, %arg5: memref<8x1xf32, #tpu.memory_space<vmem>>, %arg6: memref<8x1xf32, #tpu.memory_space<vmem>>, %arg7: memref<1x8x64xf32, #tpu.memory_space<vmem>>, %arg8: memref<2x8x64xf32, #tpu.memory_space<vmem>>, %arg9: memref<8x1xf32, #tpu.memory_space<vmem>>, %arg10: memref<8x1xf32, #tpu.memory_space<vmem>>, %arg11: memref<8x1xf32, #tpu.memory_space<vmem>>) attributes {dimension_semantics = [#tpu.dimension_semantics<arbitrary>, #tpu.dimension_semantics<arbitrary>], iteration_bounds = array<i64: 2, 2>, scalar_prefetch = 0 : i64, scratch_operands = 4 : i64, tpu.core_type = #tpu.core_type<tc>, window_params = [{transform_indices = @transform_0, window_bounds = array<i64: 1, 4, 82>}, {pipeline_mode = #tpu.pipeline_mode<synchronous>, transform_indices = @transform_1, window_bounds = array<i64: 9, 8, 4>}, {pipeline_mode = #tpu.pipeline_mode<synchronous>, transform_indices = @transform_2, window_bounds = array<i64: 2, 64>}, {pipeline_mode = #tpu.pipeline_mode<synchronous>, transform_indices = @transform_3, window_bounds = array<i64: 8, 1>}, {pipeline_mode = #tpu.pipeline_mode<synchronous>, transform_indices = @transform_4, window_bounds = array<i64: 8, 1>}, {transform_indices = @transform_5, window_bounds = array<i64: 1, 8, 64>}]} {
    %c0_i32 = arith.constant 0 : i32
    %0 = arith.cmpi eq, %arg0, %c0_i32 : i32
    %1 = arith.extui %0 : i1 to i32
    %c0_i32_0 = arith.constant 0 : i32
    %2 = arith.cmpi ne, %1, %c0_i32_0 : i32
    scf.if %2 {
      %c0_i32_5 = arith.constant 0 : i32
      %11 = arith.cmpi eq, %arg1, %c0_i32_5 : i32
      %12 = arith.extui %11 : i1 to i32
      %c0_i32_6 = arith.constant 0 : i32
      %13 = arith.cmpi ne, %12, %c0_i32_6 : i32
      scf.if %13 {
        %cst_67 = arith.constant 0.000000e+00 : f32
        %92 = vector.broadcast %cst_67 : f32 to vector<8x1xf32>
        %c0_68 = arith.constant 0 : index
        %c0_69 = arith.constant 0 : index
        %93 = vector.load %arg9[%c0_68, %c0_69] : memref<8x1xf32, #tpu.memory_space<vmem>>, vector<8x1xf32>
        tpu.vector_store %arg9[%c0_68, %c0_69], %92 {strides = array<i32>} : memref<8x1xf32, #tpu.memory_space<vmem>>, vector<8x1xf32>,
      } else {
      }
      %c0 = arith.constant 0 : index
      %c0_7 = arith.constant 0 : index
      %14 = vector.load %arg4[%c0, %c0_7] : memref<2x64xf32, #tpu.memory_space<vmem>>, vector<1x64xf32>
      %c1 = arith.constant 1 : index
      %c0_8 = arith.constant 0 : index
      %15 = vector.load %arg4[%c1, %c0_8] : memref<2x64xf32, #tpu.memory_space<vmem>>, vector<1x64xf32>
      %cst = arith.constant 0.000000e+00 : f32
      %16 = vector.broadcast %cst : f32 to vector<8x64xf32>
      %c0_9 = arith.constant 0 : index
      %c0_10 = arith.constant 0 : index
      %c0_11 = arith.constant 0 : index
      %17 = vector.load %arg2[%c0_9, %c0_10, %c0_11] : memref<1x4x82xbf16, #tpu.memory_space<vmem>>, vector<1x4x64xbf16>
      %18 = vector.shape_cast %17 : vector<1x4x64xbf16> to vector<4x64xbf16>
      %c0_12 = arith.constant 0 : index
      %c0_13 = arith.constant 0 : index
      %c0_14 = arith.constant 0 : index
      %19 = vector.load %arg3[%c0_12, %c0_13, %c0_14] : memref<9x8x4xbf16, #tpu.memory_space<vmem>>, vector<1x8x4xbf16>
      %20 = vector.shape_cast %19 : vector<1x8x4xbf16> to vector<8x4xbf16>
      %cst_15 = arith.constant dense<0.000000e+00> : vector<8x64xf32>
      %21 = tpu.matmul %20, %18, %cst_15 {dimension_numbers = #tpu.dot_dimension_numbers<[1], [0], [0], [1], [0, 0, 1, 1], [], []>} : vector<8x4xbf16>, vector<4x64xbf16>, vector<8x64xf32> -> vector<8x64xf32>
      %22 = vector.broadcast %14 : vector<1x64xf32> to vector<8x64xf32>
      %23 = arith.mulf %21, %22 : vector<8x64xf32>
      %24 = arith.addf %16, %23 : vector<8x64xf32>
      %c0_16 = arith.constant 0 : index
      %c0_17 = arith.constant 0 : index
      %c1_18 = arith.constant 1 : index
      %25 = vector.load %arg2[%c0_16, %c0_17, %c1_18] : memref<1x4x82xbf16, #tpu.memory_space<vmem>>, vector<1x4x64xbf16>
      %26 = vector.shape_cast %25 : vector<1x4x64xbf16> to vector<4x64xbf16>
      %c1_19 = arith.constant 1 : index
      %c0_20 = arith.constant 0 : index
      %c0_21 = arith.constant 0 : index
      %27 = vector.load %arg3[%c1_19, %c0_20, %c0_21] : memref<9x8x4xbf16, #tpu.memory_space<vmem>>, vector<1x8x4xbf16>
      %28 = vector.shape_cast %27 : vector<1x8x4xbf16> to vector<8x4xbf16>
      %cst_22 = arith.constant dense<0.000000e+00> : vector<8x64xf32>
      %29 = tpu.matmul %28, %26, %cst_22 {dimension_numbers = #tpu.dot_dimension_numbers<[1], [0], [0], [1], [0, 0, 1, 1], [], []>} : vector<8x4xbf16>, vector<4x64xbf16>, vector<8x64xf32> -> vector<8x64xf32>
      %30 = arith.addf %24, %29 : vector<8x64xf32>
      %c0_23 = arith.constant 0 : index
      %c0_24 = arith.constant 0 : index
      %c2 = arith.constant 2 : index
      %31 = vector.load %arg2[%c0_23, %c0_24, %c2] : memref<1x4x82xbf16, #tpu.memory_space<vmem>>, vector<1x4x64xbf16>
      %32 = vector.shape_cast %31 : vector<1x4x64xbf16> to vector<4x64xbf16>
      %c2_25 = arith.constant 2 : index
      %c0_26 = arith.constant 0 : index
      %c0_27 = arith.constant 0 : index
      %33 = vector.load %arg3[%c2_25, %c0_26, %c0_27] : memref<9x8x4xbf16, #tpu.memory_space<vmem>>, vector<1x8x4xbf16>
      %34 = vector.shape_cast %33 : vector<1x8x4xbf16> to vector<8x4xbf16>
      %cst_28 = arith.constant dense<0.000000e+00> : vector<8x64xf32>
      %35 = tpu.matmul %34, %32, %cst_28 {dimension_numbers = #tpu.dot_dimension_numbers<[1], [0], [0], [1], [0, 0, 1, 1], [], []>} : vector<8x4xbf16>, vector<4x64xbf16>, vector<8x64xf32> -> vector<8x64xf32>
      %36 = vector.broadcast %15 : vector<1x64xf32> to vector<8x64xf32>
      %37 = arith.mulf %35, %36 : vector<8x64xf32>
      %38 = arith.addf %30, %37 : vector<8x64xf32>
      %c0_29 = arith.constant 0 : index
      %c0_30 = arith.constant 0 : index
      %c8 = arith.constant 8 : index
      %39 = vector.load %arg2[%c0_29, %c0_30, %c8] : memref<1x4x82xbf16, #tpu.memory_space<vmem>>, vector<1x4x64xbf16>
      %40 = vector.shape_cast %39 : vector<1x4x64xbf16> to vector<4x64xbf16>
      %c3 = arith.constant 3 : index
      %c0_31 = arith.constant 0 : index
      %c0_32 = arith.constant 0 : index
      %41 = vector.load %arg3[%c3, %c0_31, %c0_32] : memref<9x8x4xbf16, #tpu.memory_space<vmem>>, vector<1x8x4xbf16>
      %42 = vector.shape_cast %41 : vector<1x8x4xbf16> to vector<8x4xbf16>
      %cst_33 = arith.constant dense<0.000000e+00> : vector<8x64xf32>
      %43 = tpu.matmul %42, %40, %cst_33 {dimension_numbers = #tpu.dot_dimension_numbers<[1], [0], [0], [1], [0, 0, 1, 1], [], []>} : vector<8x4xbf16>, vector<4x64xbf16>, vector<8x64xf32> -> vector<8x64xf32>
      %44 = vector.broadcast %14 : vector<1x64xf32> to vector<8x64xf32>
      %45 = arith.mulf %43, %44 : vector<8x64xf32>
      %46 = arith.addf %38, %45 : vector<8x64xf32>
      %c0_34 = arith.constant 0 : index
      %c0_35 = arith.constant 0 : index
      %c9 = arith.constant 9 : index
      %47 = vector.load %arg2[%c0_34, %c0_35, %c9] : memref<1x4x82xbf16, #tpu.memory_space<vmem>>, vector<1x4x64xbf16>
      %48 = vector.shape_cast %47 : vector<1x4x64xbf16> to vector<4x64xbf16>
      %c4 = arith.constant 4 : index
      %c0_36 = arith.constant 0 : index
      %c0_37 = arith.constant 0 : index
      %49 = vector.load %arg3[%c4, %c0_36, %c0_37] : memref<9x8x4xbf16, #tpu.memory_space<vmem>>, vector<1x8x4xbf16>
      %50 = vector.shape_cast %49 : vector<1x8x4xbf16> to vector<8x4xbf16>
      %cst_38 = arith.constant dense<0.000000e+00> : vector<8x64xf32>
      %51 = tpu.matmul %50, %48, %cst_38 {dimension_numbers = #tpu.dot_dimension_numbers<[1], [0], [0], [1], [0, 0, 1, 1], [], []>} : vector<8x4xbf16>, vector<4x64xbf16>, vector<8x64xf32> -> vector<8x64xf32>
      %52 = arith.addf %46, %51 : vector<8x64xf32>
      %c0_39 = arith.constant 0 : index
      %c0_40 = arith.constant 0 : index
      %c10 = arith.constant 10 : index
      %53 = vector.load %arg2[%c0_39, %c0_40, %c10] : memref<1x4x82xbf16, #tpu.memory_space<vmem>>, vector<1x4x64xbf16>
      %54 = vector.shape_cast %53 : vector<1x4x64xbf16> to vector<4x64xbf16>
      %c5 = arith.constant 5 : index
      %c0_41 = arith.constant 0 : index
      %c0_42 = arith.constant 0 : index
      %55 = vector.load %arg3[%c5, %c0_41, %c0_42] : memref<9x8x4xbf16, #tpu.memory_space<vmem>>, vector<1x8x4xbf16>
      %56 = vector.shape_cast %55 : vector<1x8x4xbf16> to vector<8x4xbf16>
      %cst_43 = arith.constant dense<0.000000e+00> : vector<8x64xf32>
      %57 = tpu.matmul %56, %54, %cst_43 {dimension_numbers = #tpu.dot_dimension_numbers<[1], [0], [0], [1], [0, 0, 1, 1], [], []>} : vector<8x4xbf16>, vector<4x64xbf16>, vector<8x64xf32> -> vector<8x64xf32>
      %58 = vector.broadcast %15 : vector<1x64xf32> to vector<8x64xf32>
      %59 = arith.mulf %57, %58 : vector<8x64xf32>
      %60 = arith.addf %52, %59 : vector<8x64xf32>
      %c0_44 = arith.constant 0 : index
      %c0_45 = arith.constant 0 : index
      %c16 = arith.constant 16 : index
      %61 = vector.load %arg2[%c0_44, %c0_45, %c16] : memref<1x4x82xbf16, #tpu.memory_space<vmem>>, vector<1x4x64xbf16>
      %62 = vector.shape_cast %61 : vector<1x4x64xbf16> to vector<4x64xbf16>
      %c6 = arith.constant 6 : index
      %c0_46 = arith.constant 0 : index
      %c0_47 = arith.constant 0 : index
      %63 = vector.load %arg3[%c6, %c0_46, %c0_47] : memref<9x8x4xbf16, #tpu.memory_space<vmem>>, vector<1x8x4xbf16>
      %64 = vector.shape_cast %63 : vector<1x8x4xbf16> to vector<8x4xbf16>
      %cst_48 = arith.constant dense<0.000000e+00> : vector<8x64xf32>
      %65 = tpu.matmul %64, %62, %cst_48 {dimension_numbers = #tpu.dot_dimension_numbers<[1], [0], [0], [1], [0, 0, 1, 1], [], []>} : vector<8x4xbf16>, vector<4x64xbf16>, vector<8x64xf32> -> vector<8x64xf32>
      %66 = vector.broadcast %14 : vector<1x64xf32> to vector<8x64xf32>
      %67 = arith.mulf %65, %66 : vector<8x64xf32>
      %68 = arith.addf %60, %67 : vector<8x64xf32>
      %c0_49 = arith.constant 0 : index
      %c0_50 = arith.constant 0 : index
      %c17 = arith.constant 17 : index
      %69 = vector.load %arg2[%c0_49, %c0_50, %c17] : memref<1x4x82xbf16, #tpu.memory_space<vmem>>, vector<1x4x64xbf16>
      %70 = vector.shape_cast %69 : vector<1x4x64xbf16> to vector<4x64xbf16>
      %c7 = arith.constant 7 : index
      %c0_51 = arith.constant 0 : index
      %c0_52 = arith.constant 0 : index
      %71 = vector.load %arg3[%c7, %c0_51, %c0_52] : memref<9x8x4xbf16, #tpu.memory_space<vmem>>, vector<1x8x4xbf16>
      %72 = vector.shape_cast %71 : vector<1x8x4xbf16> to vector<8x4xbf16>
      %cst_53 = arith.constant dense<0.000000e+00> : vector<8x64xf32>
      %73 = tpu.matmul %72, %70, %cst_53 {dimension_numbers = #tpu.dot_dimension_numbers<[1], [0], [0], [1], [0, 0, 1, 1], [], []>} : vector<8x4xbf16>, vector<4x64xbf16>, vector<8x64xf32> -> vector<8x64xf32>
      %74 = arith.addf %68, %73 : vector<8x64xf32>
      %c0_54 = arith.constant 0 : index
      %c0_55 = arith.constant 0 : index
      %c18 = arith.constant 18 : index
      %75 = vector.load %arg2[%c0_54, %c0_55, %c18] : memref<1x4x82xbf16, #tpu.memory_space<vmem>>, vector<1x4x64xbf16>
      %76 = vector.shape_cast %75 : vector<1x4x64xbf16> to vector<4x64xbf16>
      %c8_56 = arith.constant 8 : index
      %c0_57 = arith.constant 0 : index
      %c0_58 = arith.constant 0 : index
      %77 = vector.load %arg3[%c8_56, %c0_57, %c0_58] : memref<9x8x4xbf16, #tpu.memory_space<vmem>>, vector<1x8x4xbf16>
      %78 = vector.shape_cast %77 : vector<1x8x4xbf16> to vector<8x4xbf16>
      %cst_59 = arith.constant dense<0.000000e+00> : vector<8x64xf32>
      %79 = tpu.matmul %78, %76, %cst_59 {dimension_numbers = #tpu.dot_dimension_numbers<[1], [0], [0], [1], [0, 0, 1, 1], [], []>} : vector<8x4xbf16>, vector<4x64xbf16>, vector<8x64xf32> -> vector<8x64xf32>
      %80 = vector.broadcast %15 : vector<1x64xf32> to vector<8x64xf32>
      %81 = arith.mulf %79, %80 : vector<8x64xf32>
      %82 = arith.addf %74, %81 : vector<8x64xf32>
      %83 = arith.index_cast %arg1 : i32 to index
      %c0_60 = arith.constant 0 : index
      %c0_61 = arith.constant 0 : index
      %84 = vector.load %arg8[%83, %c0_60, %c0_61] : memref<2x8x64xf32, #tpu.memory_space<vmem>>, vector<1x8x64xf32>
      %85 = vector.shape_cast %84 : vector<1x8x64xf32> to vector<8x64xf32>
      %86 = vector.shape_cast %82 : vector<8x64xf32> to vector<1x8x64xf32>
      tpu.vector_store %arg8[%83, %c0_60, %c0_61], %86 {strides = array<i32>} : memref<2x8x64xf32, #tpu.memory_space<vmem>>, vector<1x8x64xf32>,
      %c0_62 = arith.constant 0 : index
      %c0_63 = arith.constant 0 : index
      %87 = vector.load %arg9[%c0_62, %c0_63] : memref<8x1xf32, #tpu.memory_space<vmem>>, vector<8x1xf32>
      %cst_64 = arith.constant dense<0.000000e+00> : vector<8xf32>
      %88 = vector.multi_reduction <add>, %82, %cst_64 [1] : vector<8x64xf32> to vector<8xf32>
      %89 = vector.shape_cast %88 : vector<8xf32> to vector<8x1xf32>
      %90 = arith.addf %87, %89 : vector<8x1xf32>
      %c0_65 = arith.constant 0 : index
      %c0_66 = arith.constant 0 : index
      %91 = vector.load %arg9[%c0_65, %c0_66] : memref<8x1xf32, #tpu.memory_space<vmem>>, vector<8x1xf32>
      tpu.vector_store %arg9[%c0_65, %c0_66], %90 {strides = array<i32>} : memref<8x1xf32, #tpu.memory_space<vmem>>, vector<8x1xf32>,
    } else {
    }
    %c1_i32 = arith.constant 1 : i32
    %3 = arith.cmpi eq, %arg0, %c1_i32 : i32
    %c0_i32_1 = arith.constant 0 : i32
    %4 = arith.cmpi eq, %arg1, %c0_i32_1 : i32
    %5 = arith.andi %3, %4 : i1
    %6 = arith.extui %5 : i1 to i32
    %c0_i32_2 = arith.constant 0 : i32
    %7 = arith.cmpi ne, %6, %c0_i32_2 : i32
    scf.if %7 {
      %c0 = arith.constant 0 : index
      %c0_5 = arith.constant 0 : index
      %11 = vector.load %arg9[%c0, %c0_5] : memref<8x1xf32, #tpu.memory_space<vmem>>, vector<8x1xf32>
      %cst = arith.constant 7.812500e-03 : f32
      %12 = vector.broadcast %cst : f32 to vector<8x1xf32>
      %13 = arith.mulf %11, %12 : vector<8x1xf32>
      %cst_6 = arith.constant 0.000000e+00 : f32
      %14 = vector.broadcast %cst_6 : f32 to vector<8x1xf32>
      %c0_i32_7 = arith.constant 0 : i32
      %c2_i32 = arith.constant 2 : i32
      %15 = arith.addi %c0_i32_7, %c2_i32 : i32
      %c1_i32_8 = arith.constant 1 : i32
      %16 = scf.for %arg12 = %c0_i32_7 to %15 step %c1_i32_8 iter_args(%arg13 = %14) -> (vector<8x1xf32>)  : i32 {
        %29 = arith.index_cast %arg12 : i32 to index
        %c0_20 = arith.constant 0 : index
        %c0_21 = arith.constant 0 : index
        %30 = vector.load %arg8[%29, %c0_20, %c0_21] : memref<2x8x64xf32, #tpu.memory_space<vmem>>, vector<1x8x64xf32>
        %31 = vector.shape_cast %30 : vector<1x8x64xf32> to vector<8x64xf32>
        %32 = vector.broadcast %13 : vector<8x1xf32> to vector<8x64xf32>
        %33 = arith.subf %31, %32 : vector<8x64xf32>
        %34 = arith.mulf %33, %33 : vector<8x64xf32>
        %cst_22 = arith.constant dense<0.000000e+00> : vector<8xf32>
        %35 = vector.multi_reduction <add>, %34, %cst_22 [1] : vector<8x64xf32> to vector<8xf32>
        %36 = vector.shape_cast %35 : vector<8xf32> to vector<8x1xf32>
        %37 = arith.addf %arg13, %36 : vector<8x1xf32>
        scf.yield %37 : vector<8x1xf32>
      }
      %c2_i32_9 = arith.constant 2 : i32
      %cst_10 = arith.constant 7.812500e-03 : f32
      %17 = vector.broadcast %cst_10 : f32 to vector<8x1xf32>
      %18 = arith.mulf %16, %17 : vector<8x1xf32>
      %c0_11 = arith.constant 0 : index
      %c0_12 = arith.constant 0 : index
      %19 = vector.load %arg5[%c0_11, %c0_12] : memref<8x1xf32, #tpu.memory_space<vmem>>, vector<8x1xf32>
      %cst_13 = arith.constant 9.99999974E-6 : f32
      %20 = vector.broadcast %cst_13 : f32 to vector<8x1xf32>
      %21 = arith.addf %18, %20 : vector<8x1xf32>
      %22 = math.rsqrt %21 : vector<8x1xf32>
      %23 = arith.mulf %19, %22 : vector<8x1xf32>
      %c0_14 = arith.constant 0 : index
      %c0_15 = arith.constant 0 : index
      %24 = vector.load %arg10[%c0_14, %c0_15] : memref<8x1xf32, #tpu.memory_space<vmem>>, vector<8x1xf32>
      tpu.vector_store %arg10[%c0_14, %c0_15], %23 {strides = array<i32>} : memref<8x1xf32, #tpu.memory_space<vmem>>, vector<8x1xf32>,
      %c0_16 = arith.constant 0 : index
      %c0_17 = arith.constant 0 : index
      %25 = vector.load %arg6[%c0_16, %c0_17] : memref<8x1xf32, #tpu.memory_space<vmem>>, vector<8x1xf32>
      %26 = arith.mulf %13, %23 : vector<8x1xf32>
      %27 = arith.subf %25, %26 : vector<8x1xf32>
      %c0_18 = arith.constant 0 : index
      %c0_19 = arith.constant 0 : index
      %28 = vector.load %arg11[%c0_18, %c0_19] : memref<8x1xf32, #tpu.memory_space<vmem>>, vector<8x1xf32>
      tpu.vector_store %arg11[%c0_18, %c0_19], %27 {strides = array<i32>} : memref<8x1xf32, #tpu.memory_space<vmem>>, vector<8x1xf32>,
    } else {
    }
    %c1_i32_3 = arith.constant 1 : i32
    %8 = arith.cmpi eq, %arg0, %c1_i32_3 : i32
    %9 = arith.extui %8 : i1 to i32
    %c0_i32_4 = arith.constant 0 : i32
    %10 = arith.cmpi ne, %9, %c0_i32_4 : i32
    scf.if %10 {
      %11 = arith.index_cast %arg1 : i32 to index
      %c0 = arith.constant 0 : index
      %c0_5 = arith.constant 0 : index
      %12 = vector.load %arg8[%11, %c0, %c0_5] : memref<2x8x64xf32, #tpu.memory_space<vmem>>, vector<1x8x64xf32>
      %13 = vector.shape_cast %12 : vector<1x8x64xf32> to vector<8x64xf32>
      %c0_6 = arith.constant 0 : index
      %c0_7 = arith.constant 0 : index
      %14 = vector.load %arg10[%c0_6, %c0_7] : memref<8x1xf32, #tpu.memory_space<vmem>>, vector<8x1xf32>
      %15 = vector.broadcast %14 : vector<8x1xf32> to vector<8x64xf32>
      %16 = arith.mulf %13, %15 : vector<8x64xf32>
      %c0_8 = arith.constant 0 : index
      %c0_9 = arith.constant 0 : index
      %17 = vector.load %arg11[%c0_8, %c0_9] : memref<8x1xf32, #tpu.memory_space<vmem>>, vector<8x1xf32>
      %18 = vector.broadcast %17 : vector<8x1xf32> to vector<8x64xf32>
      %19 = arith.addf %16, %18 : vector<8x64xf32>
      %cst = arith.constant 0.000000e+00 : f32
      %20 = vector.broadcast %cst : f32 to vector<8x64xf32>
      %21 = arith.maximumf %19, %20 : vector<8x64xf32>
      %c0_10 = arith.constant 0 : index
      %c0_11 = arith.constant 0 : index
      %c0_12 = arith.constant 0 : index
      %22 = vector.load %arg7[%c0_10, %c0_11, %c0_12] : memref<1x8x64xf32, #tpu.memory_space<vmem>>, vector<1x8x64xf32>
      %23 = vector.shape_cast %22 : vector<1x8x64xf32> to vector<8x64xf32>
      %24 = vector.shape_cast %21 : vector<8x64xf32> to vector<1x8x64xf32>
      tpu.vector_store %arg7[%c0_10, %c0_11, %c0_12], %24 {strides = array<i32>} : memref<1x8x64xf32, #tpu.memory_space<vmem>>, vector<1x8x64xf32>,
    } else {
    }
    return
  }
  func.func @transform_0(%arg0: i32, %arg1: i32) -> (i32, i32, i32) {
    %c1_i32 = arith.constant 1 : i32
    %0 = arith.muli %arg0, %c1_i32 : i32
    %c1_i32_0 = arith.constant 1 : i32
    %1 = arith.subi %c1_i32_0, %arg0 : i32
    %2 = arith.muli %1, %arg1 : i32
    %3 = arith.addi %0, %2 : i32
    %c0_i32 = arith.constant 0 : i32
    %c0_i32_1 = arith.constant 0 : i32
    %c0_i32_2 = arith.constant 0 : i32
    return %3, %c0_i32, %c0_i32_1 : i32, i32, i32
  }
  func.func @transform_1(%arg0: i32, %arg1: i32) -> (i32, i32, i32) {
    %c0_i32 = arith.constant 0 : i32
    %c0_i32_0 = arith.constant 0 : i32
    %c0_i32_1 = arith.constant 0 : i32
    %c0_i32_2 = arith.constant 0 : i32
    return %c0_i32, %c0_i32_0, %c0_i32_1 : i32, i32, i32
  }
  func.func @transform_2(%arg0: i32, %arg1: i32) -> (i32, i32) {
    %c0_i32 = arith.constant 0 : i32
    %c0_i32_0 = arith.constant 0 : i32
    %c0_i32_1 = arith.constant 0 : i32
    return %c0_i32, %c0_i32_0 : i32, i32
  }
  func.func @transform_3(%arg0: i32, %arg1: i32) -> (i32, i32) {
    %c0_i32 = arith.constant 0 : i32
    %c0_i32_0 = arith.constant 0 : i32
    %c0_i32_1 = arith.constant 0 : i32
    return %c0_i32, %c0_i32_0 : i32, i32
  }
  func.func @transform_4(%arg0: i32, %arg1: i32) -> (i32, i32) {
    %c0_i32 = arith.constant 0 : i32
    %c0_i32_0 = arith.constant 0 : i32
    %c0_i32_1 = arith.constant 0 : i32
    return %c0_i32, %c0_i32_0 : i32, i32
  }
  func.func @transform_5(%arg0: i32, %arg1: i32) -> (i32, i32, i32) {
    %0 = arith.muli %arg0, %arg1 : i32
    %c0_i32 = arith.constant 0 : i32
    %c0_i32_0 = arith.constant 0 : i32
    %c0_i32_1 = arith.constant 0 : i32
    return %0, %c0_i32, %c0_i32_0 : i32, i32, i32
  }
}

module attributes {stable_mosaic.version = 11 : i64} {
  func.func @_fused_conv_bn_relu_kernel(%arg0: i32, %arg1: i32, %arg2: memref<1x8x82xbf16, #tpu.memory_space<vmem>>, %arg3: memref<9x8x8xbf16, #tpu.memory_space<vmem>>, %arg4: memref<2x64xf32, #tpu.memory_space<vmem>>, %arg5: memref<8x1xf32, #tpu.memory_space<vmem>>, %arg6: memref<8x1xf32, #tpu.memory_space<vmem>>, %arg7: memref<1x8x64xf32, #tpu.memory_space<vmem>>, %arg8: memref<2x8x64xf32, #tpu.memory_space<vmem>>, %arg9: memref<8x1xf32, #tpu.memory_space<vmem>>, %arg10: memref<8x1xf32, #tpu.memory_space<vmem>>, %arg11: memref<8x1xf32, #tpu.memory_space<vmem>>) attributes {dimension_semantics = [#tpu.dimension_semantics<arbitrary>, #tpu.dimension_semantics<arbitrary>], iteration_bounds = array<i64: 2, 2>, scalar_prefetch = 0 : i64, scratch_operands = 4 : i64, tpu.core_type = #tpu.core_type<tc>, window_params = [{transform_indices = @transform_0, window_bounds = array<i64: 1, 8, 82>}, {pipeline_mode = #tpu.pipeline_mode<synchronous>, transform_indices = @transform_1, window_bounds = array<i64: 9, 8, 8>}, {pipeline_mode = #tpu.pipeline_mode<synchronous>, transform_indices = @transform_2, window_bounds = array<i64: 2, 64>}, {pipeline_mode = #tpu.pipeline_mode<synchronous>, transform_indices = @transform_3, window_bounds = array<i64: 8, 1>}, {pipeline_mode = #tpu.pipeline_mode<synchronous>, transform_indices = @transform_4, window_bounds = array<i64: 8, 1>}, {transform_indices = @transform_5, window_bounds = array<i64: 1, 8, 64>}]} {
    %c0_i32 = arith.constant 0 : i32
    %0 = arith.cmpi eq, %arg0, %c0_i32 : i32
    %1 = arith.extui %0 : i1 to i32
    %c0_i32_0 = arith.constant 0 : i32
    %2 = arith.cmpi ne, %1, %c0_i32_0 : i32
    scf.if %2 {
      %c0_i32_5 = arith.constant 0 : i32
      %11 = arith.cmpi eq, %arg1, %c0_i32_5 : i32
      %12 = arith.extui %11 : i1 to i32
      %c0_i32_6 = arith.constant 0 : i32
      %13 = arith.cmpi ne, %12, %c0_i32_6 : i32
      scf.if %13 {
        %cst_67 = arith.constant 0.000000e+00 : f32
        %92 = vector.broadcast %cst_67 : f32 to vector<8x1xf32>
        %c0_68 = arith.constant 0 : index
        %c0_69 = arith.constant 0 : index
        %93 = vector.load %arg9[%c0_68, %c0_69] : memref<8x1xf32, #tpu.memory_space<vmem>>, vector<8x1xf32>
        tpu.vector_store %arg9[%c0_68, %c0_69], %92 {strides = array<i32>} : memref<8x1xf32, #tpu.memory_space<vmem>>, vector<8x1xf32>,
      } else {
      }
      %c0 = arith.constant 0 : index
      %c0_7 = arith.constant 0 : index
      %14 = vector.load %arg4[%c0, %c0_7] : memref<2x64xf32, #tpu.memory_space<vmem>>, vector<1x64xf32>
      %c1 = arith.constant 1 : index
      %c0_8 = arith.constant 0 : index
      %15 = vector.load %arg4[%c1, %c0_8] : memref<2x64xf32, #tpu.memory_space<vmem>>, vector<1x64xf32>
      %cst = arith.constant 0.000000e+00 : f32
      %16 = vector.broadcast %cst : f32 to vector<8x64xf32>
      %c0_9 = arith.constant 0 : index
      %c0_10 = arith.constant 0 : index
      %c0_11 = arith.constant 0 : index
      %17 = vector.load %arg2[%c0_9, %c0_10, %c0_11] : memref<1x8x82xbf16, #tpu.memory_space<vmem>>, vector<1x8x64xbf16>
      %18 = vector.shape_cast %17 : vector<1x8x64xbf16> to vector<8x64xbf16>
      %c0_12 = arith.constant 0 : index
      %c0_13 = arith.constant 0 : index
      %c0_14 = arith.constant 0 : index
      %19 = vector.load %arg3[%c0_12, %c0_13, %c0_14] : memref<9x8x8xbf16, #tpu.memory_space<vmem>>, vector<1x8x8xbf16>
      %20 = vector.shape_cast %19 : vector<1x8x8xbf16> to vector<8x8xbf16>
      %cst_15 = arith.constant dense<0.000000e+00> : vector<8x64xf32>
      %21 = tpu.matmul %20, %18, %cst_15 {dimension_numbers = #tpu.dot_dimension_numbers<[1], [0], [0], [1], [0, 0, 1, 1], [], []>} : vector<8x8xbf16>, vector<8x64xbf16>, vector<8x64xf32> -> vector<8x64xf32>
      %22 = vector.broadcast %14 : vector<1x64xf32> to vector<8x64xf32>
      %23 = arith.mulf %21, %22 : vector<8x64xf32>
      %24 = arith.addf %16, %23 : vector<8x64xf32>
      %c0_16 = arith.constant 0 : index
      %c0_17 = arith.constant 0 : index
      %c1_18 = arith.constant 1 : index
      %25 = vector.load %arg2[%c0_16, %c0_17, %c1_18] : memref<1x8x82xbf16, #tpu.memory_space<vmem>>, vector<1x8x64xbf16>
      %26 = vector.shape_cast %25 : vector<1x8x64xbf16> to vector<8x64xbf16>
      %c1_19 = arith.constant 1 : index
      %c0_20 = arith.constant 0 : index
      %c0_21 = arith.constant 0 : index
      %27 = vector.load %arg3[%c1_19, %c0_20, %c0_21] : memref<9x8x8xbf16, #tpu.memory_space<vmem>>, vector<1x8x8xbf16>
      %28 = vector.shape_cast %27 : vector<1x8x8xbf16> to vector<8x8xbf16>
      %cst_22 = arith.constant dense<0.000000e+00> : vector<8x64xf32>
      %29 = tpu.matmul %28, %26, %cst_22 {dimension_numbers = #tpu.dot_dimension_numbers<[1], [0], [0], [1], [0, 0, 1, 1], [], []>} : vector<8x8xbf16>, vector<8x64xbf16>, vector<8x64xf32> -> vector<8x64xf32>
      %30 = arith.addf %24, %29 : vector<8x64xf32>
      %c0_23 = arith.constant 0 : index
      %c0_24 = arith.constant 0 : index
      %c2 = arith.constant 2 : index
      %31 = vector.load %arg2[%c0_23, %c0_24, %c2] : memref<1x8x82xbf16, #tpu.memory_space<vmem>>, vector<1x8x64xbf16>
      %32 = vector.shape_cast %31 : vector<1x8x64xbf16> to vector<8x64xbf16>
      %c2_25 = arith.constant 2 : index
      %c0_26 = arith.constant 0 : index
      %c0_27 = arith.constant 0 : index
      %33 = vector.load %arg3[%c2_25, %c0_26, %c0_27] : memref<9x8x8xbf16, #tpu.memory_space<vmem>>, vector<1x8x8xbf16>
      %34 = vector.shape_cast %33 : vector<1x8x8xbf16> to vector<8x8xbf16>
      %cst_28 = arith.constant dense<0.000000e+00> : vector<8x64xf32>
      %35 = tpu.matmul %34, %32, %cst_28 {dimension_numbers = #tpu.dot_dimension_numbers<[1], [0], [0], [1], [0, 0, 1, 1], [], []>} : vector<8x8xbf16>, vector<8x64xbf16>, vector<8x64xf32> -> vector<8x64xf32>
      %36 = vector.broadcast %15 : vector<1x64xf32> to vector<8x64xf32>
      %37 = arith.mulf %35, %36 : vector<8x64xf32>
      %38 = arith.addf %30, %37 : vector<8x64xf32>
      %c0_29 = arith.constant 0 : index
      %c0_30 = arith.constant 0 : index
      %c8 = arith.constant 8 : index
      %39 = vector.load %arg2[%c0_29, %c0_30, %c8] : memref<1x8x82xbf16, #tpu.memory_space<vmem>>, vector<1x8x64xbf16>
      %40 = vector.shape_cast %39 : vector<1x8x64xbf16> to vector<8x64xbf16>
      %c3 = arith.constant 3 : index
      %c0_31 = arith.constant 0 : index
      %c0_32 = arith.constant 0 : index
      %41 = vector.load %arg3[%c3, %c0_31, %c0_32] : memref<9x8x8xbf16, #tpu.memory_space<vmem>>, vector<1x8x8xbf16>
      %42 = vector.shape_cast %41 : vector<1x8x8xbf16> to vector<8x8xbf16>
      %cst_33 = arith.constant dense<0.000000e+00> : vector<8x64xf32>
      %43 = tpu.matmul %42, %40, %cst_33 {dimension_numbers = #tpu.dot_dimension_numbers<[1], [0], [0], [1], [0, 0, 1, 1], [], []>} : vector<8x8xbf16>, vector<8x64xbf16>, vector<8x64xf32> -> vector<8x64xf32>
      %44 = vector.broadcast %14 : vector<1x64xf32> to vector<8x64xf32>
      %45 = arith.mulf %43, %44 : vector<8x64xf32>
      %46 = arith.addf %38, %45 : vector<8x64xf32>
      %c0_34 = arith.constant 0 : index
      %c0_35 = arith.constant 0 : index
      %c9 = arith.constant 9 : index
      %47 = vector.load %arg2[%c0_34, %c0_35, %c9] : memref<1x8x82xbf16, #tpu.memory_space<vmem>>, vector<1x8x64xbf16>
      %48 = vector.shape_cast %47 : vector<1x8x64xbf16> to vector<8x64xbf16>
      %c4 = arith.constant 4 : index
      %c0_36 = arith.constant 0 : index
      %c0_37 = arith.constant 0 : index
      %49 = vector.load %arg3[%c4, %c0_36, %c0_37] : memref<9x8x8xbf16, #tpu.memory_space<vmem>>, vector<1x8x8xbf16>
      %50 = vector.shape_cast %49 : vector<1x8x8xbf16> to vector<8x8xbf16>
      %cst_38 = arith.constant dense<0.000000e+00> : vector<8x64xf32>
      %51 = tpu.matmul %50, %48, %cst_38 {dimension_numbers = #tpu.dot_dimension_numbers<[1], [0], [0], [1], [0, 0, 1, 1], [], []>} : vector<8x8xbf16>, vector<8x64xbf16>, vector<8x64xf32> -> vector<8x64xf32>
      %52 = arith.addf %46, %51 : vector<8x64xf32>
      %c0_39 = arith.constant 0 : index
      %c0_40 = arith.constant 0 : index
      %c10 = arith.constant 10 : index
      %53 = vector.load %arg2[%c0_39, %c0_40, %c10] : memref<1x8x82xbf16, #tpu.memory_space<vmem>>, vector<1x8x64xbf16>
      %54 = vector.shape_cast %53 : vector<1x8x64xbf16> to vector<8x64xbf16>
      %c5 = arith.constant 5 : index
      %c0_41 = arith.constant 0 : index
      %c0_42 = arith.constant 0 : index
      %55 = vector.load %arg3[%c5, %c0_41, %c0_42] : memref<9x8x8xbf16, #tpu.memory_space<vmem>>, vector<1x8x8xbf16>
      %56 = vector.shape_cast %55 : vector<1x8x8xbf16> to vector<8x8xbf16>
      %cst_43 = arith.constant dense<0.000000e+00> : vector<8x64xf32>
      %57 = tpu.matmul %56, %54, %cst_43 {dimension_numbers = #tpu.dot_dimension_numbers<[1], [0], [0], [1], [0, 0, 1, 1], [], []>} : vector<8x8xbf16>, vector<8x64xbf16>, vector<8x64xf32> -> vector<8x64xf32>
      %58 = vector.broadcast %15 : vector<1x64xf32> to vector<8x64xf32>
      %59 = arith.mulf %57, %58 : vector<8x64xf32>
      %60 = arith.addf %52, %59 : vector<8x64xf32>
      %c0_44 = arith.constant 0 : index
      %c0_45 = arith.constant 0 : index
      %c16 = arith.constant 16 : index
      %61 = vector.load %arg2[%c0_44, %c0_45, %c16] : memref<1x8x82xbf16, #tpu.memory_space<vmem>>, vector<1x8x64xbf16>
      %62 = vector.shape_cast %61 : vector<1x8x64xbf16> to vector<8x64xbf16>
      %c6 = arith.constant 6 : index
      %c0_46 = arith.constant 0 : index
      %c0_47 = arith.constant 0 : index
      %63 = vector.load %arg3[%c6, %c0_46, %c0_47] : memref<9x8x8xbf16, #tpu.memory_space<vmem>>, vector<1x8x8xbf16>
      %64 = vector.shape_cast %63 : vector<1x8x8xbf16> to vector<8x8xbf16>
      %cst_48 = arith.constant dense<0.000000e+00> : vector<8x64xf32>
      %65 = tpu.matmul %64, %62, %cst_48 {dimension_numbers = #tpu.dot_dimension_numbers<[1], [0], [0], [1], [0, 0, 1, 1], [], []>} : vector<8x8xbf16>, vector<8x64xbf16>, vector<8x64xf32> -> vector<8x64xf32>
      %66 = vector.broadcast %14 : vector<1x64xf32> to vector<8x64xf32>
      %67 = arith.mulf %65, %66 : vector<8x64xf32>
      %68 = arith.addf %60, %67 : vector<8x64xf32>
      %c0_49 = arith.constant 0 : index
      %c0_50 = arith.constant 0 : index
      %c17 = arith.constant 17 : index
      %69 = vector.load %arg2[%c0_49, %c0_50, %c17] : memref<1x8x82xbf16, #tpu.memory_space<vmem>>, vector<1x8x64xbf16>
      %70 = vector.shape_cast %69 : vector<1x8x64xbf16> to vector<8x64xbf16>
      %c7 = arith.constant 7 : index
      %c0_51 = arith.constant 0 : index
      %c0_52 = arith.constant 0 : index
      %71 = vector.load %arg3[%c7, %c0_51, %c0_52] : memref<9x8x8xbf16, #tpu.memory_space<vmem>>, vector<1x8x8xbf16>
      %72 = vector.shape_cast %71 : vector<1x8x8xbf16> to vector<8x8xbf16>
      %cst_53 = arith.constant dense<0.000000e+00> : vector<8x64xf32>
      %73 = tpu.matmul %72, %70, %cst_53 {dimension_numbers = #tpu.dot_dimension_numbers<[1], [0], [0], [1], [0, 0, 1, 1], [], []>} : vector<8x8xbf16>, vector<8x64xbf16>, vector<8x64xf32> -> vector<8x64xf32>
      %74 = arith.addf %68, %73 : vector<8x64xf32>
      %c0_54 = arith.constant 0 : index
      %c0_55 = arith.constant 0 : index
      %c18 = arith.constant 18 : index
      %75 = vector.load %arg2[%c0_54, %c0_55, %c18] : memref<1x8x82xbf16, #tpu.memory_space<vmem>>, vector<1x8x64xbf16>
      %76 = vector.shape_cast %75 : vector<1x8x64xbf16> to vector<8x64xbf16>
      %c8_56 = arith.constant 8 : index
      %c0_57 = arith.constant 0 : index
      %c0_58 = arith.constant 0 : index
      %77 = vector.load %arg3[%c8_56, %c0_57, %c0_58] : memref<9x8x8xbf16, #tpu.memory_space<vmem>>, vector<1x8x8xbf16>
      %78 = vector.shape_cast %77 : vector<1x8x8xbf16> to vector<8x8xbf16>
      %cst_59 = arith.constant dense<0.000000e+00> : vector<8x64xf32>
      %79 = tpu.matmul %78, %76, %cst_59 {dimension_numbers = #tpu.dot_dimension_numbers<[1], [0], [0], [1], [0, 0, 1, 1], [], []>} : vector<8x8xbf16>, vector<8x64xbf16>, vector<8x64xf32> -> vector<8x64xf32>
      %80 = vector.broadcast %15 : vector<1x64xf32> to vector<8x64xf32>
      %81 = arith.mulf %79, %80 : vector<8x64xf32>
      %82 = arith.addf %74, %81 : vector<8x64xf32>
      %83 = arith.index_cast %arg1 : i32 to index
      %c0_60 = arith.constant 0 : index
      %c0_61 = arith.constant 0 : index
      %84 = vector.load %arg8[%83, %c0_60, %c0_61] : memref<2x8x64xf32, #tpu.memory_space<vmem>>, vector<1x8x64xf32>
      %85 = vector.shape_cast %84 : vector<1x8x64xf32> to vector<8x64xf32>
      %86 = vector.shape_cast %82 : vector<8x64xf32> to vector<1x8x64xf32>
      tpu.vector_store %arg8[%83, %c0_60, %c0_61], %86 {strides = array<i32>} : memref<2x8x64xf32, #tpu.memory_space<vmem>>, vector<1x8x64xf32>,
      %c0_62 = arith.constant 0 : index
      %c0_63 = arith.constant 0 : index
      %87 = vector.load %arg9[%c0_62, %c0_63] : memref<8x1xf32, #tpu.memory_space<vmem>>, vector<8x1xf32>
      %cst_64 = arith.constant dense<0.000000e+00> : vector<8xf32>
      %88 = vector.multi_reduction <add>, %82, %cst_64 [1] : vector<8x64xf32> to vector<8xf32>
      %89 = vector.shape_cast %88 : vector<8xf32> to vector<8x1xf32>
      %90 = arith.addf %87, %89 : vector<8x1xf32>
      %c0_65 = arith.constant 0 : index
      %c0_66 = arith.constant 0 : index
      %91 = vector.load %arg9[%c0_65, %c0_66] : memref<8x1xf32, #tpu.memory_space<vmem>>, vector<8x1xf32>
      tpu.vector_store %arg9[%c0_65, %c0_66], %90 {strides = array<i32>} : memref<8x1xf32, #tpu.memory_space<vmem>>, vector<8x1xf32>,
    } else {
    }
    %c1_i32 = arith.constant 1 : i32
    %3 = arith.cmpi eq, %arg0, %c1_i32 : i32
    %c0_i32_1 = arith.constant 0 : i32
    %4 = arith.cmpi eq, %arg1, %c0_i32_1 : i32
    %5 = arith.andi %3, %4 : i1
    %6 = arith.extui %5 : i1 to i32
    %c0_i32_2 = arith.constant 0 : i32
    %7 = arith.cmpi ne, %6, %c0_i32_2 : i32
    scf.if %7 {
      %c0 = arith.constant 0 : index
      %c0_5 = arith.constant 0 : index
      %11 = vector.load %arg9[%c0, %c0_5] : memref<8x1xf32, #tpu.memory_space<vmem>>, vector<8x1xf32>
      %cst = arith.constant 7.812500e-03 : f32
      %12 = vector.broadcast %cst : f32 to vector<8x1xf32>
      %13 = arith.mulf %11, %12 : vector<8x1xf32>
      %cst_6 = arith.constant 0.000000e+00 : f32
      %14 = vector.broadcast %cst_6 : f32 to vector<8x1xf32>
      %c0_i32_7 = arith.constant 0 : i32
      %c2_i32 = arith.constant 2 : i32
      %15 = arith.addi %c0_i32_7, %c2_i32 : i32
      %c1_i32_8 = arith.constant 1 : i32
      %16 = scf.for %arg12 = %c0_i32_7 to %15 step %c1_i32_8 iter_args(%arg13 = %14) -> (vector<8x1xf32>)  : i32 {
        %29 = arith.index_cast %arg12 : i32 to index
        %c0_20 = arith.constant 0 : index
        %c0_21 = arith.constant 0 : index
        %30 = vector.load %arg8[%29, %c0_20, %c0_21] : memref<2x8x64xf32, #tpu.memory_space<vmem>>, vector<1x8x64xf32>
        %31 = vector.shape_cast %30 : vector<1x8x64xf32> to vector<8x64xf32>
        %32 = vector.broadcast %13 : vector<8x1xf32> to vector<8x64xf32>
        %33 = arith.subf %31, %32 : vector<8x64xf32>
        %34 = arith.mulf %33, %33 : vector<8x64xf32>
        %cst_22 = arith.constant dense<0.000000e+00> : vector<8xf32>
        %35 = vector.multi_reduction <add>, %34, %cst_22 [1] : vector<8x64xf32> to vector<8xf32>
        %36 = vector.shape_cast %35 : vector<8xf32> to vector<8x1xf32>
        %37 = arith.addf %arg13, %36 : vector<8x1xf32>
        scf.yield %37 : vector<8x1xf32>
      }
      %c2_i32_9 = arith.constant 2 : i32
      %cst_10 = arith.constant 7.812500e-03 : f32
      %17 = vector.broadcast %cst_10 : f32 to vector<8x1xf32>
      %18 = arith.mulf %16, %17 : vector<8x1xf32>
      %c0_11 = arith.constant 0 : index
      %c0_12 = arith.constant 0 : index
      %19 = vector.load %arg5[%c0_11, %c0_12] : memref<8x1xf32, #tpu.memory_space<vmem>>, vector<8x1xf32>
      %cst_13 = arith.constant 9.99999974E-6 : f32
      %20 = vector.broadcast %cst_13 : f32 to vector<8x1xf32>
      %21 = arith.addf %18, %20 : vector<8x1xf32>
      %22 = math.rsqrt %21 : vector<8x1xf32>
      %23 = arith.mulf %19, %22 : vector<8x1xf32>
      %c0_14 = arith.constant 0 : index
      %c0_15 = arith.constant 0 : index
      %24 = vector.load %arg10[%c0_14, %c0_15] : memref<8x1xf32, #tpu.memory_space<vmem>>, vector<8x1xf32>
      tpu.vector_store %arg10[%c0_14, %c0_15], %23 {strides = array<i32>} : memref<8x1xf32, #tpu.memory_space<vmem>>, vector<8x1xf32>,
      %c0_16 = arith.constant 0 : index
      %c0_17 = arith.constant 0 : index
      %25 = vector.load %arg6[%c0_16, %c0_17] : memref<8x1xf32, #tpu.memory_space<vmem>>, vector<8x1xf32>
      %26 = arith.mulf %13, %23 : vector<8x1xf32>
      %27 = arith.subf %25, %26 : vector<8x1xf32>
      %c0_18 = arith.constant 0 : index
      %c0_19 = arith.constant 0 : index
      %28 = vector.load %arg11[%c0_18, %c0_19] : memref<8x1xf32, #tpu.memory_space<vmem>>, vector<8x1xf32>
      tpu.vector_store %arg11[%c0_18, %c0_19], %27 {strides = array<i32>} : memref<8x1xf32, #tpu.memory_space<vmem>>, vector<8x1xf32>,
    } else {
    }
    %c1_i32_3 = arith.constant 1 : i32
    %8 = arith.cmpi eq, %arg0, %c1_i32_3 : i32
    %9 = arith.extui %8 : i1 to i32
    %c0_i32_4 = arith.constant 0 : i32
    %10 = arith.cmpi ne, %9, %c0_i32_4 : i32
    scf.if %10 {
      %11 = arith.index_cast %arg1 : i32 to index
      %c0 = arith.constant 0 : index
      %c0_5 = arith.constant 0 : index
      %12 = vector.load %arg8[%11, %c0, %c0_5] : memref<2x8x64xf32, #tpu.memory_space<vmem>>, vector<1x8x64xf32>
      %13 = vector.shape_cast %12 : vector<1x8x64xf32> to vector<8x64xf32>
      %c0_6 = arith.constant 0 : index
      %c0_7 = arith.constant 0 : index
      %14 = vector.load %arg10[%c0_6, %c0_7] : memref<8x1xf32, #tpu.memory_space<vmem>>, vector<8x1xf32>
      %15 = vector.broadcast %14 : vector<8x1xf32> to vector<8x64xf32>
      %16 = arith.mulf %13, %15 : vector<8x64xf32>
      %c0_8 = arith.constant 0 : index
      %c0_9 = arith.constant 0 : index
      %17 = vector.load %arg11[%c0_8, %c0_9] : memref<8x1xf32, #tpu.memory_space<vmem>>, vector<8x1xf32>
      %18 = vector.broadcast %17 : vector<8x1xf32> to vector<8x64xf32>
      %19 = arith.addf %16, %18 : vector<8x64xf32>
      %cst = arith.constant 0.000000e+00 : f32
      %20 = vector.broadcast %cst : f32 to vector<8x64xf32>
      %21 = arith.maximumf %19, %20 : vector<8x64xf32>
      %c0_10 = arith.constant 0 : index
      %c0_11 = arith.constant 0 : index
      %c0_12 = arith.constant 0 : index
      %22 = vector.load %arg7[%c0_10, %c0_11, %c0_12] : memref<1x8x64xf32, #tpu.memory_space<vmem>>, vector<1x8x64xf32>
      %23 = vector.shape_cast %22 : vector<1x8x64xf32> to vector<8x64xf32>
      %24 = vector.shape_cast %21 : vector<8x64xf32> to vector<1x8x64xf32>
      tpu.vector_store %arg7[%c0_10, %c0_11, %c0_12], %24 {strides = array<i32>} : memref<1x8x64xf32, #tpu.memory_space<vmem>>, vector<1x8x64xf32>,
    } else {
    }
    return
  }
  func.func @transform_0(%arg0: i32, %arg1: i32) -> (i32, i32, i32) {
    %c1_i32 = arith.constant 1 : i32
    %0 = arith.muli %arg0, %c1_i32 : i32
    %c1_i32_0 = arith.constant 1 : i32
    %1 = arith.subi %c1_i32_0, %arg0 : i32
    %2 = arith.muli %1, %arg1 : i32
    %3 = arith.addi %0, %2 : i32
    %c0_i32 = arith.constant 0 : i32
    %c0_i32_1 = arith.constant 0 : i32
    %c0_i32_2 = arith.constant 0 : i32
    return %3, %c0_i32, %c0_i32_1 : i32, i32, i32
  }
  func.func @transform_1(%arg0: i32, %arg1: i32) -> (i32, i32, i32) {
    %c0_i32 = arith.constant 0 : i32
    %c0_i32_0 = arith.constant 0 : i32
    %c0_i32_1 = arith.constant 0 : i32
    %c0_i32_2 = arith.constant 0 : i32
    return %c0_i32, %c0_i32_0, %c0_i32_1 : i32, i32, i32
  }
  func.func @transform_2(%arg0: i32, %arg1: i32) -> (i32, i32) {
    %c0_i32 = arith.constant 0 : i32
    %c0_i32_0 = arith.constant 0 : i32
    %c0_i32_1 = arith.constant 0 : i32
    return %c0_i32, %c0_i32_0 : i32, i32
  }
  func.func @transform_3(%arg0: i32, %arg1: i32) -> (i32, i32) {
    %c0_i32 = arith.constant 0 : i32
    %c0_i32_0 = arith.constant 0 : i32
    %c0_i32_1 = arith.constant 0 : i32
    return %c0_i32, %c0_i32_0 : i32, i32
  }
  func.func @transform_4(%arg0: i32, %arg1: i32) -> (i32, i32) {
    %c0_i32 = arith.constant 0 : i32
    %c0_i32_0 = arith.constant 0 : i32
    %c0_i32_1 = arith.constant 0 : i32
    return %c0_i32, %c0_i32_0 : i32, i32
  }
  func.func @transform_5(%arg0: i32, %arg1: i32) -> (i32, i32, i32) {
    %0 = arith.muli %arg0, %arg1 : i32
    %c0_i32 = arith.constant 0 : i32
    %c0_i32_0 = arith.constant 0 : i32
    %c0_i32_1 = arith.constant 0 : i32
    return %0, %c0_i32, %c0_i32_0 : i32, i32, i32
  }
}

</mosaic_0001>

<llo_original>
// kernel: down_block_forward.2
$region0: #{down_block_forward.2}
  #allocation0 [shape = 'u32[]', space=smem, size = 0x4, offset = 0x4, fixed_abs, tag = 'smem constant byte address 0x4 - core index']
  #allocation1 [shape = 'u32[144,128]{1,0:T(1,128)}', space=vmem, size = 0x12000, scoped, tag = 'internal scratch']
  #allocation2 [shape = 'f32[2,8,64]{2,1,0:T(8,128)}', space=vmem, size = 0x2000, scoped, tag = 'scratch operand']
  #allocation3 [shape = 'f32[8,1]{1,0:T(8,128)}', space=vmem, size = 0x1000, scoped, tag = 'scratch operand']
  #allocation4 [shape = 'f32[8,1]{1,0:T(8,128)}', space=vmem, size = 0x1000, scoped, tag = 'scratch operand']
  #allocation5 [shape = 'f32[8,1]{1,0:T(8,128)}', space=vmem, size = 0x1000, scoped, tag = 'scratch operand']
  %s0 = inlined_call_operand.vmem [shape: bf16[2,4,82], index: 0, kind: input, shape index: {}]
  %s1 = inlined_call_operand.vmem [shape: bf16[9,8,4], index: 1, kind: input, shape index: {}]
  %s2 = inlined_call_operand.vmem [shape: f32[2,64], index: 2, kind: input, shape index: {}]
  %s3 = inlined_call_operand.vmem [shape: f32[8,1], index: 3, kind: input, shape index: {}]
  %s4 = inlined_call_operand.vmem [shape: f32[8,1], index: 4, kind: input, shape index: {}]
  %s5 = inlined_call_operand.vmem [shape: f32[2,8,64], index: 5, kind: output, shape index: {}]
  %s6 = sld [smem:[#allocation0]]
  $region76: #{down_block_forward.2} parent=0
    _
  %s8 = ssub.s32 1, %s6
  %s9 = scalar_select 0, %s8, %s6
  loop: start=0, step=1, limit=6
  $region2: #{down_block_forward.2} parent=0 // loop_pre_header
    _
  $region3: #{down_block_forward.2} parent=0 // loop_header
    %s11 = sphi 0, %s15
    %p12 = scmp.ge.s32.totalorder %s11, 6
    %s18 = sphi 0, %s30
    %s19 = sphi 0, %s26
    %s20 = sphi 0, %s18
    %s21 = sphi 0, %s19
    %s22 = sphi 0, %s20
    %s23 = sphi 0, %s21
    %s39 = sphi 0, %s41
    %s42 = sphi 0, %s39
    %s43 = sphi 0, %s42
    %s59 = sphi 0, %s43
    %s63 = sphi 0, %s63
    %s65 = sphi 0, %s63
    %s66 = sphi 0, %s65
    %s80 = sphi 0, %s66
    %s84 = sphi 0, %s84
    %s86 = sphi 0, %s84
    %s87 = sphi 0, %s86
    %s101 = sphi 0, %s87
    %s105 = sphi 0, %s105
    %s107 = sphi 0, %s105
    %s108 = sphi 0, %s107
    %s122 = sphi 0, %s108
    %s126 = sphi 0, %s126
    %s128 = sphi 0, %s126
    %s129 = sphi 0, %s128
    %s143 = sphi 0, %s129
    %s151 = sphi 0, %s153
    %s154 = sphi 0, %s151
    %s155 = sphi 0, %s154
    %s171 = sphi 0, %s155
  $region4: #{down_block_forward.2} parent=0 // loop_header_branch
    %14 = sbr.rel (%p12) target = $region8
  $region5: #{down_block_forward.2} parent=0 // loop_body
    %s16 = ssub.s32 %s11, 1
    %s17 = ssub.s32 %s11, 2
    %s24 = sadd.s32 1, %s19
    %p25 = scmp.ge.s32.totalorder %s24, 2
    %s26 = scalar_select %p25, 0, %s24
    %s27 = sadd.s32 1, %s18
    %s28 = scalar_select %p25, %s27, %s18
    %p29 = scmp.ge.s32.totalorder %s28, 2
    %s30 = scalar_select %p29, 0, %s28
    %s31 = ssub.s32 1, %s18
    %s32 = smul.u32 %s31, %s19
    %s33 = sadd.s32 %s18, %s32
    %s34 = ssub.s32 1, %s30
    %s35 = smul.u32 %s34, %s26
    %s36 = sadd.s32 %s30, %s35
    %s37 = ssub.s32 %s33, %s36
    %p38 = scmp.eq.s32.totalorder %s37, 0
    %s40 = sadd.s32 %s39, 1
    %s41 = scalar_select %p38, %s39, %s40
    %p44 = pneg %p38
    %p45 = scmp.eq.s32.totalorder %s11, 3
    %p46 = por %p44, %p45
    %p47 = scmp.ne.s32.totalorder %s39, %s42
    %p48 = scmp.eq.s32.totalorder %s11, 0
    %p49 = por %p47, %p48
    %p50 = scmp.ne.s32.totalorder %s39, %s42
    %p51 = scmp.eq.s32.totalorder %s16, 3
    %p52 = por %p50, %p51
    %p53 = scmp.ne.s32.totalorder %s42, %s43
    %p54 = scmp.eq.s32.totalorder %s16, 0
    %p55 = por %p53, %p54
    %p56 = scmp.ne.s32.totalorder %s42, %s43
    %p57 = scmp.eq.s32.totalorder %s17, 3
    %p58 = por %p56, %p57
    %p60 = scmp.ne.s32.totalorder %s43, %s59
    %p61 = scmp.eq.s32.totalorder %s17, 0
    %p62 = por %p60, %p61
    %s64 = sadd.s32 %s63, 1
    %p67 = scmp.eq.s32.totalorder %s11, 3
    %p68 = scmp.ne.s32.totalorder %s63, %s65
    %p69 = scmp.eq.s32.totalorder %s11, 0
    %p70 = por %p68, %p69
    %p71 = scmp.ne.s32.totalorder %s63, %s65
    %p72 = scmp.eq.s32.totalorder %s16, 3
    %p73 = por %p71, %p72
    %p74 = scmp.ne.s32.totalorder %s65, %s66
    %p75 = scmp.eq.s32.totalorder %s16, 0
    %p76 = por %p74, %p75
    %p77 = scmp.ne.s32.totalorder %s65, %s66
    %p78 = scmp.eq.s32.totalorder %s17, 3
    %p79 = por %p77, %p78
    %p81 = scmp.ne.s32.totalorder %s66, %s80
    %p82 = scmp.eq.s32.totalorder %s17, 0
    %p83 = por %p81, %p82
    %s85 = sadd.s32 %s84, 1
    %p88 = scmp.eq.s32.totalorder %s11, 3
    %p89 = scmp.ne.s32.totalorder %s84, %s86
    %p90 = scmp.eq.s32.totalorder %s11, 0
    %p91 = por %p89, %p90
    %p92 = scmp.ne.s32.totalorder %s84, %s86
    %p93 = scmp.eq.s32.totalorder %s16, 3
    %p94 = por %p92, %p93
    %p95 = scmp.ne.s32.totalorder %s86, %s87
    %p96 = scmp.eq.s32.totalorder %s16, 0
    %p97 = por %p95, %p96
    %p98 = scmp.ne.s32.totalorder %s86, %s87
    %p99 = scmp.eq.s32.totalorder %s17, 3
    %p100 = por %p98, %p99
    %p102 = scmp.ne.s32.totalorder %s87, %s101
    %p103 = scmp.eq.s32.totalorder %s17, 0
    %p104 = por %p102, %p103
    %s106 = sadd.s32 %s105, 1
    %p109 = scmp.eq.s32.totalorder %s11, 3
    %p110 = scmp.ne.s32.totalorder %s105, %s107
    %p111 = scmp.eq.s32.totalorder %s11, 0
    %p112 = por %p110, %p111
    %p113 = scmp.ne.s32.totalorder %s105, %s107
    %p114 = scmp.eq.s32.totalorder %s16, 3
    %p115 = por %p113, %p114
    %p116 = scmp.ne.s32.totalorder %s107, %s108
    %p117 = scmp.eq.s32.totalorder %s16, 0
    %p118 = por %p116, %p117
    %p119 = scmp.ne.s32.totalorder %s107, %s108
    %p120 = scmp.eq.s32.totalorder %s17, 3
    %p121 = por %p119, %p120
    %p123 = scmp.ne.s32.totalorder %s108, %s122
    %p124 = scmp.eq.s32.totalorder %s17, 0
    %p125 = por %p123, %p124
    %s127 = sadd.s32 %s126, 1
    %p130 = scmp.eq.s32.totalorder %s11, 3
    %p131 = scmp.ne.s32.totalorder %s126, %s128
    %p132 = scmp.eq.s32.totalorder %s11, 0
    %p133 = por %p131, %p132
    %p134 = scmp.ne.s32.totalorder %s126, %s128
    %p135 = scmp.eq.s32.totalorder %s16, 3
    %p136 = por %p134, %p135
    %p137 = scmp.ne.s32.totalorder %s128, %s129
    %p138 = scmp.eq.s32.totalorder %s16, 0
    %p139 = por %p137, %p138
    %p140 = scmp.ne.s32.totalorder %s128, %s129
    %p141 = scmp.eq.s32.totalorder %s17, 3
    %p142 = por %p140, %p141
    %p144 = scmp.ne.s32.totalorder %s129, %s143
    %p145 = scmp.eq.s32.totalorder %s17, 0
    %p146 = por %p144, %p145
    %s147 = smul.u32 %s18, %s19
    %s148 = smul.u32 %s30, %s26
    %s149 = ssub.s32 %s147, %s148
    %p150 = scmp.eq.s32.totalorder %s149, 0
    %s152 = sadd.s32 %s151, 1
    %s153 = scalar_select %p150, %s151, %s152
    %p156 = pneg %p150
    %p157 = scmp.eq.s32.totalorder %s11, 3
    %p158 = por %p156, %p157
    %p159 = scmp.ne.s32.totalorder %s151, %s154
    %p160 = scmp.eq.s32.totalorder %s11, 0
    %p161 = por %p159, %p160
    %p162 = scmp.ne.s32.totalorder %s151, %s154
    %p163 = scmp.eq.s32.totalorder %s16, 3
    %p164 = por %p162, %p163
    %p165 = scmp.ne.s32.totalorder %s154, %s155
    %p166 = scmp.eq.s32.totalorder %s16, 0
    %p167 = por %p165, %p166
    %p168 = scmp.ne.s32.totalorder %s154, %s155
    %p169 = scmp.eq.s32.totalorder %s17, 3
    %p170 = por %p168, %p169
    %p172 = scmp.ne.s32.totalorder %s155, %s171
    %p173 = scmp.eq.s32.totalorder %s17, 0
    %p174 = por %p172, %p173
    %p175 = scmp.le.s32.totalorder 1, %s11
    %p176 = scmp.lt.s32.totalorder %s11, 5
    %p177 = pnand %p175, %p176
    %p178 = pneg %p177
    // Predicated region
    $region9: #{down_block_forward.2} parent=5 // pred_check
      _
    $region10: #{down_block_forward.2} parent=5 // pred_check_branch
      %180 = sbr.rel (%p177) target = $region12
    $region11: #{down_block_forward.2} parent=5 // pred_region
      %s181 = ssub.s32 %s11, 1
      // Predicated region
      $region13: #{down_block_forward.2} parent=11 // pred_check
        %p182 = pneg %p76
      $region14: #{down_block_forward.2} parent=11 // pred_check_branch
        %184 = sbr.rel (%p182) target = $region16
      $region15: #{down_block_forward.2} parent=11 // pred_region
        _
      $region16: #{down_block_forward.2} parent=11 // pred_fallthru
        _
      // Predicated region
      $region17: #{down_block_forward.2} parent=11 // pred_check
        %p185 = pneg %p97
      $region18: #{down_block_forward.2} parent=11 // pred_check_branch
        %187 = sbr.rel (%p185) target = $region20
      $region19: #{down_block_forward.2} parent=11 // pred_region
        _
      $region20: #{down_block_forward.2} parent=11 // pred_fallthru
        _
      // Predicated region
      $region21: #{down_block_forward.2} parent=11 // pred_check
        %p188 = pneg %p118
      $region22: #{down_block_forward.2} parent=11 // pred_check_branch
        %190 = sbr.rel (%p188) target = $region24
      $region23: #{down_block_forward.2} parent=11 // pred_region
        _
      $region24: #{down_block_forward.2} parent=11 // pred_fallthru
        _
      // Predicated region
      $region25: #{down_block_forward.2} parent=11 // pred_check
        %p191 = pneg %p139
      $region26: #{down_block_forward.2} parent=11 // pred_check_branch
        %193 = sbr.rel (%p191) target = $region28
      $region27: #{down_block_forward.2} parent=11 // pred_region
        _
      $region28: #{down_block_forward.2} parent=11 // pred_fallthru
        _
    $region12: #{down_block_forward.2} parent=5 // pred_fallthru
      _
    %p194 = scmp.lt.s32.totalorder %s11, 4
    // Predicated region
    $region29: #{down_block_forward.2} parent=5 // pred_check
      %p195 = pneg %p194
    $region30: #{down_block_forward.2} parent=5 // pred_check_branch
      %197 = sbr.rel (%p195) target = $region32
    $region31: #{down_block_forward.2} parent=5 // pred_region
      // Predicated region
      $region33: #{down_block_forward.2} parent=31 // pred_check
        %p198 = pneg %p49
      $region34: #{down_block_forward.2} parent=31 // pred_check_branch
        %200 = sbr.rel (%p198) target = $region36
      $region35: #{down_block_forward.2} parent=31 // pred_region
        %s201 = ssub.s32 1, %s18
        %s202 = smul.u32 %s201, %s19
        %s203 = sadd.s32 %s18, %s202
        %p204 = scmp.lt.s32.totalorder %s203, 1
        %s205 = scalar_select %p204, %s203, 1
        %s206 = smul.addr %s205, 2
        %s207 = scalar_lea.vmem %s0, %s206
        %s208 = ssub.s32 1, %s18
        %s209 = smul.u32 %s208, %s19
        %s210 = sadd.s32 %s18, %s209
      $region36: #{down_block_forward.2} parent=31 // pred_fallthru
        _
    $region32: #{down_block_forward.2} parent=5 // pred_fallthru
      _
    %p211 = scmp.le.s32.totalorder 1, %s11
    %p212 = scmp.lt.s32.totalorder %s11, 5
    %p213 = pnand %p211, %p212
    %p214 = pneg %p213
    // Predicated region
    $region37: #{down_block_forward.2} parent=5 // pred_check
      _
    $region38: #{down_block_forward.2} parent=5 // pred_check_branch
      %216 = sbr.rel (%p213) target = $region40
    $region39: #{down_block_forward.2} parent=5 // pred_region
      %s217 = ssub.s32 %s11, 1
      %s218 = ssub.s32 1, %s20
      %s219 = smul.u32 %s218, %s21
      %s220 = sadd.s32 %s20, %s219
      %p221 = scmp.lt.s32.totalorder %s220, 1
      %s222 = scalar_select %p221, %s220, 1
      %s223 = smul.addr %s222, 2
      %s224 = scalar_lea.vmem %s0, %s223
      %p225 = pneg %p55
      %p226 = pneg %p52
      %p227 = pneg %p76
      %p228 = pneg %p73
      %p229 = pneg %p97
      %p230 = pneg %p94
      %p231 = pneg %p118
      %p232 = pneg %p115
      %p233 = pneg %p139
      %p234 = pneg %p136
      %p235 = pneg %p167
      %p236 = pneg %p164
      %s237 = smul.u32 %s20, %s21
      %p238 = scmp.lt.s32.totalorder %s237, 1
      %s239 = scalar_select %p238, %s237, 1
      %s240 = smul.addr %s239, 8
      %s241 = scalar_lea.vmem %s5, %s240
      %s242 = ssub.s32 1, %s20
      %s243 = smul.u32 %s242, %s21
      %s244 = sadd.s32 %s20, %s243
      %p245 = scmp.lt.s32.totalorder %s244, 1
      %s246 = scalar_select %p245, %s244, 1
      %s247 = smul.addr %s246, 2
      %s248 = scalar_lea.vmem %s0, %s247
      %s249 = ssub.s32 1, %s20
      %s250 = smul.u32 %s249, %s21
      %s251 = sadd.s32 %s20, %s250
      %s252 = smul.u32 %s20, %s21
      %p253 = scmp.lt.s32.totalorder %s252, 1
      %s254 = scalar_select %p253, %s252, 1
      %s255 = smul.addr %s254, 8
      %s256 = scalar_lea.vmem %s5, %s255
      %s257 = smul.u32 %s20, %s21
      %p259 = scmp.eq.s32.totalorder %s20, 0
      // Predicated region
      $region41: #{down_block_forward.2} parent=39 // pred_check
        %p260 = pneg %p259
      $region42: #{down_block_forward.2} parent=39 // pred_check_branch
        %262 = sbr.rel (%p260) target = $region44
      $region43: #{down_block_forward.2} parent=39 // pred_region
        %p263 = scmp.eq.s32.totalorder %s21, 0
        // Predicated region
        $region45: #{down_block_forward.2} parent=43 // pred_check
          %p264 = pneg %p263
        $region46: #{down_block_forward.2} parent=43 // pred_check_branch
          %266 = sbr.rel (%p264) target = $region48
        $region47: #{down_block_forward.2} parent=43 // pred_region
          %vm267 = vcmask 7168
          %268 = vst.msk [vmem:[#allocation3] sm:$0xff] %vm267, 0.0
        $region48: #{down_block_forward.2} parent=43 // pred_fallthru
          _
        %v269 = vld [vmem:[%s2] sm:$0x1]
        %v270 = vld [vmem:[%s2 + $0x1] sm:$0x1]
        %v271 = vld [vmem:[%s248] sm:$0x3]
        %v272 = vld [vmem:[%s1] sm:$0xf]
        %vm273 = vcmask 31744
        %v275 = vsel %vm273, %v272, 0
        %vm277 = vcmask 1041408
        %v279 = vsel %vm277, %v271, 0
        %281 = vmatprep.subr.bf16.mxu0 0
        %282 = vmatpush1.bf16.msra.mxu0 0
        %283 = vmatprep.subr.bf16.mxu0 0
        %284 = vmatpush1.bf16.msra.mxu0 0
        %285 = vmatprep.subr.bf16.mxu0 0
        %286 = vmatpush1.bf16.msra.mxu0 0
        %287 = vmatprep.subr.bf16.mxu0 0
        %288 = vmatpush1.bf16.msra.mxu0 0
        %289 = vmatprep.subr.bf16.mxu0 0
        %290 = vmatpush1.bf16.msra.mxu0 0
        %291 = vmatprep.subr.bf16.mxu0 0
        %292 = vmatpush1.bf16.msra.mxu0 0
        %293 = vmatprep.subr.bf16.mxu0 0
        %294 = vmatpush1.bf16.msra.mxu0 0
        %295 = vmatprep.subr.bf16.mxu0 0
        %296 = vmatpush1.bf16.msra.mxu0 %v279
        %297 = vmatprep.subr.bf16.mxu0 0
        %298 = vmatpush2.bf16.msra.mxu0 0
        %299 = vmatprep.subr.bf16.mxu0 0
        %300 = vmatpush2.bf16.msra.mxu0 0
        %301 = vmatprep.subr.bf16.mxu0 0
        %302 = vmatpush2.bf16.msra.mxu0 0
        %303 = vmatprep.subr.bf16.mxu0 0
        %304 = vmatpush2.bf16.msra.mxu0 0
        %305 = vmatprep.subr.bf16.mxu0 0
        %306 = vmatpush2.bf16.msra.mxu0 0
        %307 = vmatprep.subr.bf16.mxu0 0
        %308 = vmatpush2.bf16.msra.mxu0 0
        %309 = vmatprep.subr.bf16.mxu0 0
        %310 = vmatpush2.bf16.msra.mxu0 0
        %311 = vmatprep.subr.bf16.mxu0 0
        %312 = vmatpush2.bf16.msra.mxu0 0
        %313 = vmatprep.mubr.bf16.mxu0 0
        %314 = vmatmul.mubr.bf16.gmra.mxu0 %v275
        %v315 = vpop.f32.mrf.mxu0
        %v316 = vadd.f32 0.0, %v315
        %v317 = vpop.f32.mrf.mxu0
        %v318 = vpop.f32.mrf.mxu0
        %v319 = vpop.f32.mrf.mxu0
        %320 = vdwg.mxu0
        %v321 = vlaneseq
        %v322 = vshrl.u32 %v321, 7
        %v323 = vsub.s32 0, %v322
        %v324 = vrot.slane %v269, %v323
        %v325 = vmul.f32 %v316, %v324
        %v326 = vadd.f32 %v325, 0.0
        %s327 = scalar_lea.vmem %s1, 4
        %v328 = vld [vmem:[%s327] sm:$0xf]
        %v331 = vunpack.c.l.s4 1983009808
        %v332 = vunpack.c.0.s8 %v331
        %v333 = vlaneseq
        %v334 = vshrl.u32 %v333, 7
        %v335 = vsub.s32 %v332, %v334
        %v336 = vrot.slane %v271, %v335
        %337 = vrot.lane.b32.xlu0 %v336, 127
        %v338 = vpop.permute.xlu0 %337
        %v340 = vsel %vm273, %v328, 0
        %v343 = vsel %vm277, %v338, 0
        %345 = vmatprep.subr.bf16.mxu0 0
        %346 = vmatpush1.bf16.msra.mxu0 0
        %347 = vmatprep.subr.bf16.mxu0 0
        %348 = vmatpush1.bf16.msra.mxu0 0
        %349 = vmatprep.subr.bf16.mxu0 0
        %350 = vmatpush1.bf16.msra.mxu0 0
        %351 = vmatprep.subr.bf16.mxu0 0
        %352 = vmatpush1.bf16.msra.mxu0 0
        %353 = vmatprep.subr.bf16.mxu0 0
        %354 = vmatpush1.bf16.msra.mxu0 0
        %355 = vmatprep.subr.bf16.mxu0 0
        %356 = vmatpush1.bf16.msra.mxu0 0
        %357 = vmatprep.subr.bf16.mxu0 0
        %358 = vmatpush1.bf16.msra.mxu0 0
        %359 = vmatprep.subr.bf16.mxu0 0
        %360 = vmatpush1.bf16.msra.mxu0 %v343
        %361 = vmatprep.subr.bf16.mxu0 0
        %362 = vmatpush2.bf16.msra.mxu0 0
        %363 = vmatprep.subr.bf16.mxu0 0
        %364 = vmatpush2.bf16.msra.mxu0 0
        %365 = vmatprep.subr.bf16.mxu0 0
        %366 = vmatpush2.bf16.msra.mxu0 0
        %367 = vmatprep.subr.bf16.mxu0 0
        %368 = vmatpush2.bf16.msra.mxu0 0
        %369 = vmatprep.subr.bf16.mxu0 0
        %370 = vmatpush2.bf16.msra.mxu0 0
        %371 = vmatprep.subr.bf16.mxu0 0
        %372 = vmatpush2.bf16.msra.mxu0 0
        %373 = vmatprep.subr.bf16.mxu0 0
        %374 = vmatpush2.bf16.msra.mxu0 0
        %375 = vmatprep.subr.bf16.mxu0 0
        %376 = vmatpush2.bf16.msra.mxu0 0
        %377 = vmatprep.mubr.bf16.mxu0 0
        %378 = vmatmul.mubr.bf16.gmra.mxu0 %v340
        %v379 = vpop.f32.mrf.mxu0
        %v380 = vadd.f32 0.0, %v379
        %v381 = vpop.f32.mrf.mxu0
        %v382 = vpop.f32.mrf.mxu0
        %v383 = vpop.f32.mrf.mxu0
        %384 = vdwg.mxu0
        %v385 = vadd.f32 %v326, %v380
        %v386 = vld [vmem:[%s248] sm:$0x3]
        %s387 = scalar_lea.vmem %s1, 8
        %v388 = vld [vmem:[%s387] sm:$0xf]
        %v391 = vunpack.c.l.s4 1983009808
        %v392 = vunpack.c.0.s8 %v391
        %v393 = vlaneseq
        %v394 = vshrl.u32 %v393, 7
        %v395 = vsub.s32 %v392, %v394
        %v396 = vrot.slane %v386, %v395
        %397 = vrot.lane.b32.xlu0 %v396, 126
        %v398 = vpop.permute.xlu0 %397
        %v400 = vsel %vm273, %v388, 0
        %v403 = vsel %vm277, %v398, 0
        %405 = vmatprep.subr.bf16.mxu0 0
        %406 = vmatpush1.bf16.msra.mxu0 0
        %407 = vmatprep.subr.bf16.mxu0 0
        %408 = vmatpush1.bf16.msra.mxu0 0
        %409 = vmatprep.subr.bf16.mxu0 0
        %410 = vmatpush1.bf16.msra.mxu0 0
        %411 = vmatprep.subr.bf16.mxu0 0
        %412 = vmatpush1.bf16.msra.mxu0 0
        %413 = vmatprep.subr.bf16.mxu0 0
        %414 = vmatpush1.bf16.msra.mxu0 0
        %415 = vmatprep.subr.bf16.mxu0 0
        %416 = vmatpush1.bf16.msra.mxu0 0
        %417 = vmatprep.subr.bf16.mxu0 0
        %418 = vmatpush1.bf16.msra.mxu0 0
        %419 = vmatprep.subr.bf16.mxu0 0
        %420 = vmatpush1.bf16.msra.mxu0 %v403
        %421 = vmatprep.subr.bf16.mxu0 0
        %422 = vmatpush2.bf16.msra.mxu0 0
        %423 = vmatprep.subr.bf16.mxu0 0
        %424 = vmatpush2.bf16.msra.mxu0 0
        %425 = vmatprep.subr.bf16.mxu0 0
        %426 = vmatpush2.bf16.msra.mxu0 0
        %427 = vmatprep.subr.bf16.mxu0 0
        %428 = vmatpush2.bf16.msra.mxu0 0
        %429 = vmatprep.subr.bf16.mxu0 0
        %430 = vmatpush2.bf16.msra.mxu0 0
        %431 = vmatprep.subr.bf16.mxu0 0
        %432 = vmatpush2.bf16.msra.mxu0 0
        %433 = vmatprep.subr.bf16.mxu0 0
        %434 = vmatpush2.bf16.msra.mxu0 0
        %435 = vmatprep.subr.bf16.mxu0 0
        %436 = vmatpush2.bf16.msra.mxu0 0
        %437 = vmatprep.mubr.bf16.mxu0 0
        %438 = vmatmul.mubr.bf16.gmra.mxu0 %v400
        %v439 = vpop.f32.mrf.mxu0
        %v440 = vadd.f32 0.0, %v439
        %v441 = vpop.f32.mrf.mxu0
        %v442 = vpop.f32.mrf.mxu0
        %v443 = vpop.f32.mrf.mxu0
        %444 = vdwg.mxu0
        %v445 = vlaneseq
        %v446 = vshrl.u32 %v445, 7
        %v447 = vsub.s32 0, %v446
        %v448 = vrot.slane %v270, %v447
        %v449 = vmul.f32 %v440, %v448
        %v450 = vadd.f32 %v385, %v449
        %v451 = vld [vmem:[%s248] sm:$0x3]
        %s452 = scalar_lea.vmem %s1, 12
        %v453 = vld [vmem:[%s452] sm:$0xf]
        %v456 = vunpack.c.l.s4 1983009808
        %v457 = vunpack.c.0.s8 %v456
        %v458 = vlaneseq
        %v459 = vshrl.u32 %v458, 7
        %v460 = vsub.s32 %v457, %v459
        %v461 = vrot.slane %v451, %v460
        %462 = vrot.lane.b32.xlu0 %v461, 120
        %v463 = vpop.permute.xlu0 %462
        %v465 = vsel %vm273, %v453, 0
        %v468 = vsel %vm277, %v463, 0
        %470 = vmatprep.subr.bf16.mxu0 0
        %471 = vmatpush1.bf16.msra.mxu0 0
        %472 = vmatprep.subr.bf16.mxu0 0
        %473 = vmatpush1.bf16.msra.mxu0 0
        %474 = vmatprep.subr.bf16.mxu0 0
        %475 = vmatpush1.bf16.msra.mxu0 0
        %476 = vmatprep.subr.bf16.mxu0 0
        %477 = vmatpush1.bf16.msra.mxu0 0
        %478 = vmatprep.subr.bf16.mxu0 0
        %479 = vmatpush1.bf16.msra.mxu0 0
        %480 = vmatprep.subr.bf16.mxu0 0
        %481 = vmatpush1.bf16.msra.mxu0 0
        %482 = vmatprep.subr.bf16.mxu0 0
        %483 = vmatpush1.bf16.msra.mxu0 0
        %484 = vmatprep.subr.bf16.mxu0 0
        %485 = vmatpush1.bf16.msra.mxu0 %v468
        %486 = vmatprep.subr.bf16.mxu0 0
        %487 = vmatpush2.bf16.msra.mxu0 0
        %488 = vmatprep.subr.bf16.mxu0 0
        %489 = vmatpush2.bf16.msra.mxu0 0
        %490 = vmatprep.subr.bf16.mxu0 0
        %491 = vmatpush2.bf16.msra.mxu0 0
        %492 = vmatprep.subr.bf16.mxu0 0
        %493 = vmatpush2.bf16.msra.mxu0 0
        %494 = vmatprep.subr.bf16.mxu0 0
        %495 = vmatpush2.bf16.msra.mxu0 0
        %496 = vmatprep.subr.bf16.mxu0 0
        %497 = vmatpush2.bf16.msra.mxu0 0
        %498 = vmatprep.subr.bf16.mxu0 0
        %499 = vmatpush2.bf16.msra.mxu0 0
        %500 = vmatprep.subr.bf16.mxu0 0
        %501 = vmatpush2.bf16.msra.mxu0 0
        %502 = vmatprep.mubr.bf16.mxu0 0
        %503 = vmatmul.mubr.bf16.gmra.mxu0 %v465
        %v504 = vpop.f32.mrf.mxu0
        %v505 = vadd.f32 0.0, %v504
        %v506 = vpop.f32.mrf.mxu0
        %v507 = vpop.f32.mrf.mxu0
        %v508 = vpop.f32.mrf.mxu0
        %509 = vdwg.mxu0
        %v510 = vmul.f32 %v505, %v324
        %v511 = vadd.f32 %v450, %v510
        %v512 = vld [vmem:[%s248] sm:$0x3]
        %s513 = scalar_lea.vmem %s1, 16
        %v514 = vld [vmem:[%s513] sm:$0xf]
        %v517 = vunpack.c.l.s4 1983009808
        %v518 = vunpack.c.0.s8 %v517
        %v519 = vlaneseq
        %v520 = vshrl.u32 %v519, 7
        %v521 = vsub.s32 %v518, %v520
        %v522 = vrot.slane %v512, %v521
        %523 = vrot.lane.b32.xlu0 %v522, 119
        %v524 = vpop.permute.xlu0 %523
        %v526 = vsel %vm273, %v514, 0
        %v529 = vsel %vm277, %v524, 0
        %531 = vmatprep.subr.bf16.mxu0 0
        %532 = vmatpush1.bf16.msra.mxu0 0
        %533 = vmatprep.subr.bf16.mxu0 0
        %534 = vmatpush1.bf16.msra.mxu0 0
        %535 = vmatprep.subr.bf16.mxu0 0
        %536 = vmatpush1.bf16.msra.mxu0 0
        %537 = vmatprep.subr.bf16.mxu0 0
        %538 = vmatpush1.bf16.msra.mxu0 0
        %539 = vmatprep.subr.bf16.mxu0 0
        %540 = vmatpush1.bf16.msra.mxu0 0
        %541 = vmatprep.subr.bf16.mxu0 0
        %542 = vmatpush1.bf16.msra.mxu0 0
        %543 = vmatprep.subr.bf16.mxu0 0
        %544 = vmatpush1.bf16.msra.mxu0 0
        %545 = vmatprep.subr.bf16.mxu0 0
        %546 = vmatpush1.bf16.msra.mxu0 %v529
        %547 = vmatprep.subr.bf16.mxu0 0
        %548 = vmatpush2.bf16.msra.mxu0 0
        %549 = vmatprep.subr.bf16.mxu0 0
        %550 = vmatpush2.bf16.msra.mxu0 0
        %551 = vmatprep.subr.bf16.mxu0 0
        %552 = vmatpush2.bf16.msra.mxu0 0
        %553 = vmatprep.subr.bf16.mxu0 0
        %554 = vmatpush2.bf16.msra.mxu0 0
        %555 = vmatprep.subr.bf16.mxu0 0
        %556 = vmatpush2.bf16.msra.mxu0 0
        %557 = vmatprep.subr.bf16.mxu0 0
        %558 = vmatpush2.bf16.msra.mxu0 0
        %559 = vmatprep.subr.bf16.mxu0 0
        %560 = vmatpush2.bf16.msra.mxu0 0
        %561 = vmatprep.subr.bf16.mxu0 0
        %562 = vmatpush2.bf16.msra.mxu0 0
        %563 = vmatprep.mubr.bf16.mxu0 0
        %564 = vmatmul.mubr.bf16.gmra.mxu0 %v526
        %v565 = vpop.f32.mrf.mxu0
        %v566 = vadd.f32 0.0, %v565
        %v567 = vpop.f32.mrf.mxu0
        %v568 = vpop.f32.mrf.mxu0
        %v569 = vpop.f32.mrf.mxu0
        %570 = vdwg.mxu0
        %v571 = vadd.f32 %v511, %v566
        %v572 = vld [vmem:[%s248] sm:$0x3]
        %s573 = scalar_lea.vmem %s1, 20
        %v574 = vld [vmem:[%s573] sm:$0xf]
        %v577 = vunpack.c.l.s4 1983009808
        %v578 = vunpack.c.0.s8 %v577
        %v579 = vlaneseq
        %v580 = vshrl.u32 %v579, 7
        %v581 = vsub.s32 %v578, %v580
        %v582 = vrot.slane %v572, %v581
        %583 = vrot.lane.b32.xlu0 %v582, 118
        %v584 = vpop.permute.xlu0 %583
        %v586 = vsel %vm273, %v574, 0
        %v589 = vsel %vm277, %v584, 0
        %591 = vmatprep.subr.bf16.mxu0 0
        %592 = vmatpush1.bf16.msra.mxu0 0
        %593 = vmatprep.subr.bf16.mxu0 0
        %594 = vmatpush1.bf16.msra.mxu0 0
        %595 = vmatprep.subr.bf16.mxu0 0
        %596 = vmatpush1.bf16.msra.mxu0 0
        %597 = vmatprep.subr.bf16.mxu0 0
        %598 = vmatpush1.bf16.msra.mxu0 0
        %599 = vmatprep.subr.bf16.mxu0 0
        %600 = vmatpush1.bf16.msra.mxu0 0
        %601 = vmatprep.subr.bf16.mxu0 0
        %602 = vmatpush1.bf16.msra.mxu0 0
        %603 = vmatprep.subr.bf16.mxu0 0
        %604 = vmatpush1.bf16.msra.mxu0 0
        %605 = vmatprep.subr.bf16.mxu0 0
        %606 = vmatpush1.bf16.msra.mxu0 %v589
        %607 = vmatprep.subr.bf16.mxu0 0
        %608 = vmatpush2.bf16.msra.mxu0 0
        %609 = vmatprep.subr.bf16.mxu0 0
        %610 = vmatpush2.bf16.msra.mxu0 0
        %611 = vmatprep.subr.bf16.mxu0 0
        %612 = vmatpush2.bf16.msra.mxu0 0
        %613 = vmatprep.subr.bf16.mxu0 0
        %614 = vmatpush2.bf16.msra.mxu0 0
        %615 = vmatprep.subr.bf16.mxu0 0
        %616 = vmatpush2.bf16.msra.mxu0 0
        %617 = vmatprep.subr.bf16.mxu0 0
        %618 = vmatpush2.bf16.msra.mxu0 0
        %619 = vmatprep.subr.bf16.mxu0 0
        %620 = vmatpush2.bf16.msra.mxu0 0
        %621 = vmatprep.subr.bf16.mxu0 0
        %622 = vmatpush2.bf16.msra.mxu0 0
        %623 = vmatprep.mubr.bf16.mxu0 0
        %624 = vmatmul.mubr.bf16.gmra.mxu0 %v586
        %v625 = vpop.f32.mrf.mxu0
        %v626 = vadd.f32 0.0, %v625
        %v627 = vpop.f32.mrf.mxu0
        %v628 = vpop.f32.mrf.mxu0
        %v629 = vpop.f32.mrf.mxu0
        %630 = vdwg.mxu0
        %v631 = vmul.f32 %v626, %v448
        %v632 = vadd.f32 %v571, %v631
        %v633 = vld [vmem:[%s248] sm:$0x3]
        %s634 = scalar_lea.vmem %s1, 24
        %v635 = vld [vmem:[%s634] sm:$0xf]
        %v638 = vunpack.c.l.s4 1983009808
        %v639 = vunpack.c.0.s8 %v638
        %v640 = vlaneseq
        %v641 = vshrl.u32 %v640, 7
        %v642 = vsub.s32 %v639, %v641
        %v643 = vrot.slane %v633, %v642
        %644 = vrot.lane.b32.xlu0 %v643, 112
        %v645 = vpop.permute.xlu0 %644
        %v647 = vsel %vm273, %v635, 0
        %v650 = vsel %vm277, %v645, 0
        %652 = vmatprep.subr.bf16.mxu0 0
        %653 = vmatpush1.bf16.msra.mxu0 0
        %654 = vmatprep.subr.bf16.mxu0 0
        %655 = vmatpush1.bf16.msra.mxu0 0
        %656 = vmatprep.subr.bf16.mxu0 0
        %657 = vmatpush1.bf16.msra.mxu0 0
        %658 = vmatprep.subr.bf16.mxu0 0
        %659 = vmatpush1.bf16.msra.mxu0 0
        %660 = vmatprep.subr.bf16.mxu0 0
        %661 = vmatpush1.bf16.msra.mxu0 0
        %662 = vmatprep.subr.bf16.mxu0 0
        %663 = vmatpush1.bf16.msra.mxu0 0
        %664 = vmatprep.subr.bf16.mxu0 0
        %665 = vmatpush1.bf16.msra.mxu0 0
        %666 = vmatprep.subr.bf16.mxu0 0
        %667 = vmatpush1.bf16.msra.mxu0 %v650
        %668 = vmatprep.subr.bf16.mxu0 0
        %669 = vmatpush2.bf16.msra.mxu0 0
        %670 = vmatprep.subr.bf16.mxu0 0
        %671 = vmatpush2.bf16.msra.mxu0 0
        %672 = vmatprep.subr.bf16.mxu0 0
        %673 = vmatpush2.bf16.msra.mxu0 0
        %674 = vmatprep.subr.bf16.mxu0 0
        %675 = vmatpush2.bf16.msra.mxu0 0
        %676 = vmatprep.subr.bf16.mxu0 0
        %677 = vmatpush2.bf16.msra.mxu0 0
        %678 = vmatprep.subr.bf16.mxu0 0
        %679 = vmatpush2.bf16.msra.mxu0 0
        %680 = vmatprep.subr.bf16.mxu0 0
        %681 = vmatpush2.bf16.msra.mxu0 0
        %682 = vmatprep.subr.bf16.mxu0 0
        %683 = vmatpush2.bf16.msra.mxu0 0
        %684 = vmatprep.mubr.bf16.mxu0 0
        %685 = vmatmul.mubr.bf16.gmra.mxu0 %v647
        %v686 = vpop.f32.mrf.mxu0
        %v687 = vadd.f32 0.0, %v686
        %v688 = vpop.f32.mrf.mxu0
        %v689 = vpop.f32.mrf.mxu0
        %v690 = vpop.f32.mrf.mxu0
        %691 = vdwg.mxu0
        %v692 = vmul.f32 %v687, %v324
        %v693 = vadd.f32 %v632, %v692
        %v694 = vld [vmem:[%s248] sm:$0x3]
        %s695 = scalar_lea.vmem %s1, 28
        %v696 = vld [vmem:[%s695] sm:$0xf]
        %v699 = vunpack.c.l.s4 1983009808
        %v700 = vunpack.c.0.s8 %v699
        %v701 = vlaneseq
        %v702 = vshrl.u32 %v701, 7
        %v703 = vsub.s32 %v700, %v702
        %v704 = vrot.slane %v694, %v703
        %705 = vrot.lane.b32.xlu0 %v704, 111
        %v706 = vpop.permute.xlu0 %705
        %v708 = vsel %vm273, %v696, 0
        %v711 = vsel %vm277, %v706, 0
        %713 = vmatprep.subr.bf16.mxu0 0
        %714 = vmatpush1.bf16.msra.mxu0 0
        %715 = vmatprep.subr.bf16.mxu0 0
        %716 = vmatpush1.bf16.msra.mxu0 0
        %717 = vmatprep.subr.bf16.mxu0 0
        %718 = vmatpush1.bf16.msra.mxu0 0
        %719 = vmatprep.subr.bf16.mxu0 0
        %720 = vmatpush1.bf16.msra.mxu0 0
        %721 = vmatprep.subr.bf16.mxu0 0
        %722 = vmatpush1.bf16.msra.mxu0 0
        %723 = vmatprep.subr.bf16.mxu0 0
        %724 = vmatpush1.bf16.msra.mxu0 0
        %725 = vmatprep.subr.bf16.mxu0 0
        %726 = vmatpush1.bf16.msra.mxu0 0
        %727 = vmatprep.subr.bf16.mxu0 0
        %728 = vmatpush1.bf16.msra.mxu0 %v711
        %729 = vmatprep.subr.bf16.mxu0 0
        %730 = vmatpush2.bf16.msra.mxu0 0
        %731 = vmatprep.subr.bf16.mxu0 0
        %732 = vmatpush2.bf16.msra.mxu0 0
        %733 = vmatprep.subr.bf16.mxu0 0
        %734 = vmatpush2.bf16.msra.mxu0 0
        %735 = vmatprep.subr.bf16.mxu0 0
        %736 = vmatpush2.bf16.msra.mxu0 0
        %737 = vmatprep.subr.bf16.mxu0 0
        %738 = vmatpush2.bf16.msra.mxu0 0
        %739 = vmatprep.subr.bf16.mxu0 0
        %740 = vmatpush2.bf16.msra.mxu0 0
        %741 = vmatprep.subr.bf16.mxu0 0
        %742 = vmatpush2.bf16.msra.mxu0 0
        %743 = vmatprep.subr.bf16.mxu0 0
        %744 = vmatpush2.bf16.msra.mxu0 0
        %745 = vmatprep.mubr.bf16.mxu0 0
        %746 = vmatmul.mubr.bf16.gmra.mxu0 %v708
        %v747 = vpop.f32.mrf.mxu0
        %v748 = vadd.f32 0.0, %v747
        %v749 = vpop.f32.mrf.mxu0
        %v750 = vpop.f32.mrf.mxu0
        %v751 = vpop.f32.mrf.mxu0
        %752 = vdwg.mxu0
        %v753 = vadd.f32 %v693, %v748
        %v754 = vld [vmem:[%s248] sm:$0x3]
        %s755 = scalar_lea.vmem %s1, 32
        %v756 = vld [vmem:[%s755] sm:$0xf]
        %v759 = vunpack.c.l.s4 1983009808
        %v760 = vunpack.c.0.s8 %v759
        %v761 = vlaneseq
        %v762 = vshrl.u32 %v761, 7
        %v763 = vsub.s32 %v760, %v762
        %v764 = vrot.slane %v754, %v763
        %765 = vrot.lane.b32.xlu0 %v764, 110
        %v766 = vpop.permute.xlu0 %765
        %v768 = vsel %vm273, %v756, 0
        %v771 = vsel %vm277, %v766, 0
        %773 = vmatprep.subr.bf16.mxu0 0
        %774 = vmatpush1.bf16.msra.mxu0 0
        %775 = vmatprep.subr.bf16.mxu0 0
        %776 = vmatpush1.bf16.msra.mxu0 0
        %777 = vmatprep.subr.bf16.mxu0 0
        %778 = vmatpush1.bf16.msra.mxu0 0
        %779 = vmatprep.subr.bf16.mxu0 0
        %780 = vmatpush1.bf16.msra.mxu0 0
        %781 = vmatprep.subr.bf16.mxu0 0
        %782 = vmatpush1.bf16.msra.mxu0 0
        %783 = vmatprep.subr.bf16.mxu0 0
        %784 = vmatpush1.bf16.msra.mxu0 0
        %785 = vmatprep.subr.bf16.mxu0 0
        %786 = vmatpush1.bf16.msra.mxu0 0
        %787 = vmatprep.subr.bf16.mxu0 0
        %788 = vmatpush1.bf16.msra.mxu0 %v771
        %789 = vmatprep.subr.bf16.mxu0 0
        %790 = vmatpush2.bf16.msra.mxu0 0
        %791 = vmatprep.subr.bf16.mxu0 0
        %792 = vmatpush2.bf16.msra.mxu0 0
        %793 = vmatprep.subr.bf16.mxu0 0
        %794 = vmatpush2.bf16.msra.mxu0 0
        %795 = vmatprep.subr.bf16.mxu0 0
        %796 = vmatpush2.bf16.msra.mxu0 0
        %797 = vmatprep.subr.bf16.mxu0 0
        %798 = vmatpush2.bf16.msra.mxu0 0
        %799 = vmatprep.subr.bf16.mxu0 0
        %800 = vmatpush2.bf16.msra.mxu0 0
        %801 = vmatprep.subr.bf16.mxu0 0
        %802 = vmatpush2.bf16.msra.mxu0 0
        %803 = vmatprep.subr.bf16.mxu0 0
        %804 = vmatpush2.bf16.msra.mxu0 0
        %805 = vmatprep.mubr.bf16.mxu0 0
        %806 = vmatmul.mubr.bf16.gmra.mxu0 %v768
        %v807 = vpop.f32.mrf.mxu0
        %v808 = vadd.f32 0.0, %v807
        %v809 = vpop.f32.mrf.mxu0
        %v810 = vpop.f32.mrf.mxu0
        %v811 = vpop.f32.mrf.mxu0
        %812 = vdwg.mxu0
        %v813 = vmul.f32 %v808, %v448
        %v814 = vadd.f32 %v753, %v813
        %s815 = smul.u32 %s21, 8
        %s816 = scalar_lea.vmem [#allocation2], %s815
        %vm817 = vcmask 523264
        %818 = vst.msk [vmem:[%s816] sm:$0xff] %vm817, %v814
        %v819 = vld [vmem:[#allocation3] sm:$0xff]
        %v820 = vsel %vm817, %v814, 0.0
        %821 = vadd.xlane.f32.xlu0 %v820
        %v822 = vpop.xlane.xlu0 %821
        %v823 = vadd.f32 %v819, %v822
        %vm824 = vcmask 7168
        %825 = vst.msk [vmem:[#allocation3] sm:$0xff] %vm824, %v823
      $region44: #{down_block_forward.2} parent=39 // pred_fallthru
        _
      %p826 = scmp.eq.s32.totalorder %s20, 1
      %p827 = scmp.eq.s32.totalorder %s21, 0
      %p828 = pnand %p826, %p827
      %p829 = pneg %p828
      // Predicated region
      $region49: #{down_block_forward.2} parent=39 // pred_check
        _
      $region50: #{down_block_forward.2} parent=39 // pred_check_branch
        %831 = sbr.rel (%p828) target = $region52
      $region51: #{down_block_forward.2} parent=39 // pred_region
        %v832 = vld [vmem:[#allocation3] sm:$0xff]
        %v833 = vmul.f32 %v832, 0.0078125
        loop: start=0, step=1, limit=2
        $region53: #{down_block_forward.2} parent=51 // loop_pre_header
          _
        $region54: #{down_block_forward.2} parent=51 // loop_header
          %s835 = sphi 0, %s839
          %p836 = scmp.ge.s32.totalorder %s835, 2
          %v840 = vphi 0.0, %v855
        $region55: #{down_block_forward.2} parent=51 // loop_header_branch
          %838 = sbr.rel (%p836) target = $region59
        $region56: #{down_block_forward.2} parent=51 // loop_body
          %s841 = smul.u32 %s835, 8
          %s842 = scalar_lea.vmem [#allocation2], %s841
          %v843 = vld [vmem:[%s842] sm:$0xff]
          %845 = vset.pattern.permute.xlu0 0
          %846 = vperm.xlu0 %845, %v833
          %v847 = vpop.permute.xlu0 %846
          %v849 = vsub.f32 %v843, %v847
          %v850 = vmul.f32 %v849, %v849
          %vm851 = vcmask 523264
          %v852 = vsel %vm851, %v850, 0.0
          %853 = vadd.xlane.f32.xlu0 %v852
          %v854 = vpop.xlane.xlu0 %853
          %v855 = vadd.f32 %v840, %v854
        $region57: #{down_block_forward.2} parent=51 // loop_footer
          %s839 = sadd.s32 1, %s835
        $region58: #{down_block_forward.2} parent=51 // loop_footer_branch
          %834 = sbr.rel target = $region54
        $region59: #{down_block_forward.2} parent=51 // loop_exit
          _
        %v856 = vmul.f32 %v840, 0.0078125
        %v857 = vld [vmem:[%s3] sm:$0xff]
        %v858 = vadd.f32 %v856, 1e-05
        %v859 = vrsqrt.pop %v858
        %v860 = vmul.f32 %v857, %v859
        %vm861 = vcmask 7168
        %862 = vst.msk [vmem:[#allocation4] sm:$0xff] %vm861, %v860
        %v863 = vld [vmem:[%s4] sm:$0xff]
        %v864 = vmul.f32 %v833, %v860
        %v865 = vsub.f32 %v863, %v864
        %866 = vst.msk [vmem:[#allocation5] sm:$0xff] %vm861, %v865
      $region52: #{down_block_forward.2} parent=39 // pred_fallthru
        _
      // Predicated region
      $region60: #{down_block_forward.2} parent=39 // pred_check
        %p867 = pneg %p826
      $region61: #{down_block_forward.2} parent=39 // pred_check_branch
        %869 = sbr.rel (%p867) target = $region63
      $region62: #{down_block_forward.2} parent=39 // pred_region
        %s870 = smul.u32 %s21, 8
        %s871 = scalar_lea.vmem [#allocation2], %s870
        %v872 = vld [vmem:[%s871] sm:$0xff]
        %v873 = vld [vmem:[#allocation4] sm:$0xff]
        %875 = vset.pattern.permute.xlu0 0
        %876 = vperm.xlu0 %875, %v873
        %v877 = vpop.permute.xlu0 %876
        %v879 = vmul.f32 %v872, %v877
        %v880 = vld [vmem:[#allocation5] sm:$0xff]
        %882 = vset.pattern.permute.xlu0 0
        %883 = vperm.xlu0 %882, %v880
        %v884 = vpop.permute.xlu0 %883
        %v886 = vadd.f32 %v879, %v884
        %v887 = vmax.f32 %v886, 0.0
        %vm888 = vcmask 523264
        %889 = vst.msk [vmem:[%s256] sm:$0xff] %vm888, %v887
      $region63: #{down_block_forward.2} parent=39 // pred_fallthru
        _
      %s890 = smul.u32 %s20, %s21
      %p891 = scmp.lt.s32.totalorder %s890, 1
      %s892 = scalar_select %p891, %s890, 1
      %s893 = smul.addr %s892, 8
      %s894 = scalar_lea.vmem %s5, %s893
      // Predicated region
      $region64: #{down_block_forward.2} parent=39 // pred_check
        %p895 = pneg %p164
      $region65: #{down_block_forward.2} parent=39 // pred_check_branch
        %897 = sbr.rel (%p895) target = $region67
      $region66: #{down_block_forward.2} parent=39 // pred_region
        %s898 = smul.u32 %s20, %s21
      $region67: #{down_block_forward.2} parent=39 // pred_fallthru
        _
    $region40: #{down_block_forward.2} parent=5 // pred_fallthru
      _
    %p899 = scmp.le.s32.totalorder 2, %s11
    // Predicated region
    $region68: #{down_block_forward.2} parent=5 // pred_check
      %p900 = pneg %p899
    $region69: #{down_block_forward.2} parent=5 // pred_check_branch
      %902 = sbr.rel (%p900) target = $region71
    $region70: #{down_block_forward.2} parent=5 // pred_region
      %s903 = ssub.s32 %s11, 2
      // Predicated region
      $region72: #{down_block_forward.2} parent=70 // pred_check
        %p904 = pneg %p170
      $region73: #{down_block_forward.2} parent=70 // pred_check_branch
        %906 = sbr.rel (%p904) target = $region75
      $region74: #{down_block_forward.2} parent=70 // pred_region
        %s907 = smul.u32 %s22, %s23
        %p908 = scmp.lt.s32.totalorder %s907, 1
        %s909 = scalar_select %p908, %s907, 1
        %s910 = smul.addr %s909, 8
        %s911 = scalar_lea.vmem %s5, %s910
      $region75: #{down_block_forward.2} parent=70 // pred_fallthru
        _
    $region71: #{down_block_forward.2} parent=5 // pred_fallthru
      _
  $region6: #{down_block_forward.2} parent=0 // loop_footer
    %s15 = sadd.s32 1, %s11
  $region7: #{down_block_forward.2} parent=0 // loop_footer_branch
    %10 = sbr.rel target = $region3
  $region8: #{down_block_forward.2} parent=0 // loop_exit
    _

// kernel: down_block_forward.3
$region0: #{down_block_forward.3}
  #allocation0 [shape = 'u32[]', space=smem, size = 0x4, offset = 0x4, fixed_abs, tag = 'smem constant byte address 0x4 - core index']
  #allocation1 [shape = 'u32[144,128]{1,0:T(1,128)}', space=vmem, size = 0x12000, scoped, tag = 'internal scratch']
  #allocation2 [shape = 'f32[2,8,64]{2,1,0:T(8,128)}', space=vmem, size = 0x2000, scoped, tag = 'scratch operand']
  #allocation3 [shape = 'f32[8,1]{1,0:T(8,128)}', space=vmem, size = 0x1000, scoped, tag = 'scratch operand']
  #allocation4 [shape = 'f32[8,1]{1,0:T(8,128)}', space=vmem, size = 0x1000, scoped, tag = 'scratch operand']
  #allocation5 [shape = 'f32[8,1]{1,0:T(8,128)}', space=vmem, size = 0x1000, scoped, tag = 'scratch operand']
  %s0 = inlined_call_operand.vmem [shape: bf16[2,8,82], index: 0, kind: input, shape index: {}]
  %s1 = inlined_call_operand.vmem [shape: bf16[9,8,8], index: 1, kind: input, shape index: {}]
  %s2 = inlined_call_operand.vmem [shape: f32[2,64], index: 2, kind: input, shape index: {}]
  %s3 = inlined_call_operand.vmem [shape: f32[8,1], index: 3, kind: input, shape index: {}]
  %s4 = inlined_call_operand.vmem [shape: f32[8,1], index: 4, kind: input, shape index: {}]
  %s5 = inlined_call_operand.vmem [shape: f32[2,8,64], index: 5, kind: output, shape index: {}]
  %s6 = sld [smem:[#allocation0]]
  $region76: #{down_block_forward.3} parent=0
    _
  %s8 = ssub.s32 1, %s6
  %s9 = scalar_select 0, %s8, %s6
  loop: start=0, step=1, limit=6
  $region2: #{down_block_forward.3} parent=0 // loop_pre_header
    _
  $region3: #{down_block_forward.3} parent=0 // loop_header
    %s11 = sphi 0, %s15
    %p12 = scmp.ge.s32.totalorder %s11, 6
    %s18 = sphi 0, %s30
    %s19 = sphi 0, %s26
    %s20 = sphi 0, %s18
    %s21 = sphi 0, %s19
    %s22 = sphi 0, %s20
    %s23 = sphi 0, %s21
    %s39 = sphi 0, %s41
    %s42 = sphi 0, %s39
    %s43 = sphi 0, %s42
    %s59 = sphi 0, %s43
    %s63 = sphi 0, %s63
    %s65 = sphi 0, %s63
    %s66 = sphi 0, %s65
    %s80 = sphi 0, %s66
    %s84 = sphi 0, %s84
    %s86 = sphi 0, %s84
    %s87 = sphi 0, %s86
    %s101 = sphi 0, %s87
    %s105 = sphi 0, %s105
    %s107 = sphi 0, %s105
    %s108 = sphi 0, %s107
    %s122 = sphi 0, %s108
    %s126 = sphi 0, %s126
    %s128 = sphi 0, %s126
    %s129 = sphi 0, %s128
    %s143 = sphi 0, %s129
    %s151 = sphi 0, %s153
    %s154 = sphi 0, %s151
    %s155 = sphi 0, %s154
    %s171 = sphi 0, %s155
  $region4: #{down_block_forward.3} parent=0 // loop_header_branch
    %14 = sbr.rel (%p12) target = $region8
  $region5: #{down_block_forward.3} parent=0 // loop_body
    %s16 = ssub.s32 %s11, 1
    %s17 = ssub.s32 %s11, 2
    %s24 = sadd.s32 1, %s19
    %p25 = scmp.ge.s32.totalorder %s24, 2
    %s26 = scalar_select %p25, 0, %s24
    %s27 = sadd.s32 1, %s18
    %s28 = scalar_select %p25, %s27, %s18
    %p29 = scmp.ge.s32.totalorder %s28, 2
    %s30 = scalar_select %p29, 0, %s28
    %s31 = ssub.s32 1, %s18
    %s32 = smul.u32 %s31, %s19
    %s33 = sadd.s32 %s18, %s32
    %s34 = ssub.s32 1, %s30
    %s35 = smul.u32 %s34, %s26
    %s36 = sadd.s32 %s30, %s35
    %s37 = ssub.s32 %s33, %s36
    %p38 = scmp.eq.s32.totalorder %s37, 0
    %s40 = sadd.s32 %s39, 1
    %s41 = scalar_select %p38, %s39, %s40
    %p44 = pneg %p38
    %p45 = scmp.eq.s32.totalorder %s11, 3
    %p46 = por %p44, %p45
    %p47 = scmp.ne.s32.totalorder %s39, %s42
    %p48 = scmp.eq.s32.totalorder %s11, 0
    %p49 = por %p47, %p48
    %p50 = scmp.ne.s32.totalorder %s39, %s42
    %p51 = scmp.eq.s32.totalorder %s16, 3
    %p52 = por %p50, %p51
    %p53 = scmp.ne.s32.totalorder %s42, %s43
    %p54 = scmp.eq.s32.totalorder %s16, 0
    %p55 = por %p53, %p54
    %p56 = scmp.ne.s32.totalorder %s42, %s43
    %p57 = scmp.eq.s32.totalorder %s17, 3
    %p58 = por %p56, %p57
    %p60 = scmp.ne.s32.totalorder %s43, %s59
    %p61 = scmp.eq.s32.totalorder %s17, 0
    %p62 = por %p60, %p61
    %s64 = sadd.s32 %s63, 1
    %p67 = scmp.eq.s32.totalorder %s11, 3
    %p68 = scmp.ne.s32.totalorder %s63, %s65
    %p69 = scmp.eq.s32.totalorder %s11, 0
    %p70 = por %p68, %p69
    %p71 = scmp.ne.s32.totalorder %s63, %s65
    %p72 = scmp.eq.s32.totalorder %s16, 3
    %p73 = por %p71, %p72
    %p74 = scmp.ne.s32.totalorder %s65, %s66
    %p75 = scmp.eq.s32.totalorder %s16, 0
    %p76 = por %p74, %p75
    %p77 = scmp.ne.s32.totalorder %s65, %s66
    %p78 = scmp.eq.s32.totalorder %s17, 3
    %p79 = por %p77, %p78
    %p81 = scmp.ne.s32.totalorder %s66, %s80
    %p82 = scmp.eq.s32.totalorder %s17, 0
    %p83 = por %p81, %p82
    %s85 = sadd.s32 %s84, 1
    %p88 = scmp.eq.s32.totalorder %s11, 3
    %p89 = scmp.ne.s32.totalorder %s84, %s86
    %p90 = scmp.eq.s32.totalorder %s11, 0
    %p91 = por %p89, %p90
    %p92 = scmp.ne.s32.totalorder %s84, %s86
    %p93 = scmp.eq.s32.totalorder %s16, 3
    %p94 = por %p92, %p93
    %p95 = scmp.ne.s32.totalorder %s86, %s87
    %p96 = scmp.eq.s32.totalorder %s16, 0
    %p97 = por %p95, %p96
    %p98 = scmp.ne.s32.totalorder %s86, %s87
    %p99 = scmp.eq.s32.totalorder %s17, 3
    %p100 = por %p98, %p99
    %p102 = scmp.ne.s32.totalorder %s87, %s101
    %p103 = scmp.eq.s32.totalorder %s17, 0
    %p104 = por %p102, %p103
    %s106 = sadd.s32 %s105, 1
    %p109 = scmp.eq.s32.totalorder %s11, 3
    %p110 = scmp.ne.s32.totalorder %s105, %s107
    %p111 = scmp.eq.s32.totalorder %s11, 0
    %p112 = por %p110, %p111
    %p113 = scmp.ne.s32.totalorder %s105, %s107
    %p114 = scmp.eq.s32.totalorder %s16, 3
    %p115 = por %p113, %p114
    %p116 = scmp.ne.s32.totalorder %s107, %s108
    %p117 = scmp.eq.s32.totalorder %s16, 0
    %p118 = por %p116, %p117
    %p119 = scmp.ne.s32.totalorder %s107, %s108
    %p120 = scmp.eq.s32.totalorder %s17, 3
    %p121 = por %p119, %p120
    %p123 = scmp.ne.s32.totalorder %s108, %s122
    %p124 = scmp.eq.s32.totalorder %s17, 0
    %p125 = por %p123, %p124
    %s127 = sadd.s32 %s126, 1
    %p130 = scmp.eq.s32.totalorder %s11, 3
    %p131 = scmp.ne.s32.totalorder %s126, %s128
    %p132 = scmp.eq.s32.totalorder %s11, 0
    %p133 = por %p131, %p132
    %p134 = scmp.ne.s32.totalorder %s126, %s128
    %p135 = scmp.eq.s32.totalorder %s16, 3
    %p136 = por %p134, %p135
    %p137 = scmp.ne.s32.totalorder %s128, %s129
    %p138 = scmp.eq.s32.totalorder %s16, 0
    %p139 = por %p137, %p138
    %p140 = scmp.ne.s32.totalorder %s128, %s129
    %p141 = scmp.eq.s32.totalorder %s17, 3
    %p142 = por %p140, %p141
    %p144 = scmp.ne.s32.totalorder %s129, %s143
    %p145 = scmp.eq.s32.totalorder %s17, 0
    %p146 = por %p144, %p145
    %s147 = smul.u32 %s18, %s19
    %s148 = smul.u32 %s30, %s26
    %s149 = ssub.s32 %s147, %s148
    %p150 = scmp.eq.s32.totalorder %s149, 0
    %s152 = sadd.s32 %s151, 1
    %s153 = scalar_select %p150, %s151, %s152
    %p156 = pneg %p150
    %p157 = scmp.eq.s32.totalorder %s11, 3
    %p158 = por %p156, %p157
    %p159 = scmp.ne.s32.totalorder %s151, %s154
    %p160 = scmp.eq.s32.totalorder %s11, 0
    %p161 = por %p159, %p160
    %p162 = scmp.ne.s32.totalorder %s151, %s154
    %p163 = scmp.eq.s32.totalorder %s16, 3
    %p164 = por %p162, %p163
    %p165 = scmp.ne.s32.totalorder %s154, %s155
    %p166 = scmp.eq.s32.totalorder %s16, 0
    %p167 = por %p165, %p166
    %p168 = scmp.ne.s32.totalorder %s154, %s155
    %p169 = scmp.eq.s32.totalorder %s17, 3
    %p170 = por %p168, %p169
    %p172 = scmp.ne.s32.totalorder %s155, %s171
    %p173 = scmp.eq.s32.totalorder %s17, 0
    %p174 = por %p172, %p173
    %p175 = scmp.le.s32.totalorder 1, %s11
    %p176 = scmp.lt.s32.totalorder %s11, 5
    %p177 = pnand %p175, %p176
    %p178 = pneg %p177
    // Predicated region
    $region9: #{down_block_forward.3} parent=5 // pred_check
      _
    $region10: #{down_block_forward.3} parent=5 // pred_check_branch
      %180 = sbr.rel (%p177) target = $region12
    $region11: #{down_block_forward.3} parent=5 // pred_region
      %s181 = ssub.s32 %s11, 1
      // Predicated region
      $region13: #{down_block_forward.3} parent=11 // pred_check
        %p182 = pneg %p76
      $region14: #{down_block_forward.3} parent=11 // pred_check_branch
        %184 = sbr.rel (%p182) target = $region16
      $region15: #{down_block_forward.3} parent=11 // pred_region
        _
      $region16: #{down_block_forward.3} parent=11 // pred_fallthru
        _
      // Predicated region
      $region17: #{down_block_forward.3} parent=11 // pred_check
        %p185 = pneg %p97
      $region18: #{down_block_forward.3} parent=11 // pred_check_branch
        %187 = sbr.rel (%p185) target = $region20
      $region19: #{down_block_forward.3} parent=11 // pred_region
        _
      $region20: #{down_block_forward.3} parent=11 // pred_fallthru
        _
      // Predicated region
      $region21: #{down_block_forward.3} parent=11 // pred_check
        %p188 = pneg %p118
      $region22: #{down_block_forward.3} parent=11 // pred_check_branch
        %190 = sbr.rel (%p188) target = $region24
      $region23: #{down_block_forward.3} parent=11 // pred_region
        _
      $region24: #{down_block_forward.3} parent=11 // pred_fallthru
        _
      // Predicated region
      $region25: #{down_block_forward.3} parent=11 // pred_check
        %p191 = pneg %p139
      $region26: #{down_block_forward.3} parent=11 // pred_check_branch
        %193 = sbr.rel (%p191) target = $region28
      $region27: #{down_block_forward.3} parent=11 // pred_region
        _
      $region28: #{down_block_forward.3} parent=11 // pred_fallthru
        _
    $region12: #{down_block_forward.3} parent=5 // pred_fallthru
      _
    %p194 = scmp.lt.s32.totalorder %s11, 4
    // Predicated region
    $region29: #{down_block_forward.3} parent=5 // pred_check
      %p195 = pneg %p194
    $region30: #{down_block_forward.3} parent=5 // pred_check_branch
      %197 = sbr.rel (%p195) target = $region32
    $region31: #{down_block_forward.3} parent=5 // pred_region
      // Predicated region
      $region33: #{down_block_forward.3} parent=31 // pred_check
        %p198 = pneg %p49
      $region34: #{down_block_forward.3} parent=31 // pred_check_branch
        %200 = sbr.rel (%p198) target = $region36
      $region35: #{down_block_forward.3} parent=31 // pred_region
        %s201 = ssub.s32 1, %s18
        %s202 = smul.u32 %s201, %s19
        %s203 = sadd.s32 %s18, %s202
        %p204 = scmp.lt.s32.totalorder %s203, 1
        %s205 = scalar_select %p204, %s203, 1
        %s206 = smul.addr %s205, 4
        %s207 = scalar_lea.vmem %s0, %s206
        %s208 = ssub.s32 1, %s18
        %s209 = smul.u32 %s208, %s19
        %s210 = sadd.s32 %s18, %s209
      $region36: #{down_block_forward.3} parent=31 // pred_fallthru
        _
    $region32: #{down_block_forward.3} parent=5 // pred_fallthru
      _
    %p211 = scmp.le.s32.totalorder 1, %s11
    %p212 = scmp.lt.s32.totalorder %s11, 5
    %p213 = pnand %p211, %p212
    %p214 = pneg %p213
    // Predicated region
    $region37: #{down_block_forward.3} parent=5 // pred_check
      _
    $region38: #{down_block_forward.3} parent=5 // pred_check_branch
      %216 = sbr.rel (%p213) target = $region40
    $region39: #{down_block_forward.3} parent=5 // pred_region
      %s217 = ssub.s32 %s11, 1
      %s218 = ssub.s32 1, %s20
      %s219 = smul.u32 %s218, %s21
      %s220 = sadd.s32 %s20, %s219
      %p221 = scmp.lt.s32.totalorder %s220, 1
      %s222 = scalar_select %p221, %s220, 1
      %s223 = smul.addr %s222, 4
      %s224 = scalar_lea.vmem %s0, %s223
      %p225 = pneg %p55
      %p226 = pneg %p52
      %p227 = pneg %p76
      %p228 = pneg %p73
      %p229 = pneg %p97
      %p230 = pneg %p94
      %p231 = pneg %p118
      %p232 = pneg %p115
      %p233 = pneg %p139
      %p234 = pneg %p136
      %p235 = pneg %p167
      %p236 = pneg %p164
      %s237 = smul.u32 %s20, %s21
      %p238 = scmp.lt.s32.totalorder %s237, 1
      %s239 = scalar_select %p238, %s237, 1
      %s240 = smul.addr %s239, 8
      %s241 = scalar_lea.vmem %s5, %s240
      %s242 = ssub.s32 1, %s20
      %s243 = smul.u32 %s242, %s21
      %s244 = sadd.s32 %s20, %s243
      %p245 = scmp.lt.s32.totalorder %s244, 1
      %s246 = scalar_select %p245, %s244, 1
      %s247 = smul.addr %s246, 4
      %s248 = scalar_lea.vmem %s0, %s247
      %s249 = ssub.s32 1, %s20
      %s250 = smul.u32 %s249, %s21
      %s251 = sadd.s32 %s20, %s250
      %s252 = smul.u32 %s20, %s21
      %p253 = scmp.lt.s32.totalorder %s252, 1
      %s254 = scalar_select %p253, %s252, 1
      %s255 = smul.addr %s254, 8
      %s256 = scalar_lea.vmem %s5, %s255
      %s257 = smul.u32 %s20, %s21
      %p259 = scmp.eq.s32.totalorder %s20, 0
      // Predicated region
      $region41: #{down_block_forward.3} parent=39 // pred_check
        %p260 = pneg %p259
      $region42: #{down_block_forward.3} parent=39 // pred_check_branch
        %262 = sbr.rel (%p260) target = $region44
      $region43: #{down_block_forward.3} parent=39 // pred_region
        %p263 = scmp.eq.s32.totalorder %s21, 0
        // Predicated region
        $region45: #{down_block_forward.3} parent=43 // pred_check
          %p264 = pneg %p263
        $region46: #{down_block_forward.3} parent=43 // pred_check_branch
          %266 = sbr.rel (%p264) target = $region48
        $region47: #{down_block_forward.3} parent=43 // pred_region
          %vm267 = vcmask 7168
          %268 = vst.msk [vmem:[#allocation3] sm:$0xff] %vm267, 0.0
        $region48: #{down_block_forward.3} parent=43 // pred_fallthru
          _
        %v269 = vld [vmem:[%s2] sm:$0x1]
        %v270 = vld [vmem:[%s2 + $0x1] sm:$0x1]
        %v271 = vld [vmem:[%s248] sm:$0xf]
        %v272 = vld [vmem:[%s1] sm:$0xf]
        %vm273 = vcmask 64512
        %v275 = vsel %vm273, %v272, 0
        %vm277 = vcmask 1043456
        %v279 = vsel %vm277, %v271, 0
        %281 = vmatprep.subr.bf16.mxu0 0
        %282 = vmatpush1.bf16.msra.mxu0 0
        %283 = vmatprep.subr.bf16.mxu0 0
        %284 = vmatpush1.bf16.msra.mxu0 0
        %285 = vmatprep.subr.bf16.mxu0 0
        %286 = vmatpush1.bf16.msra.mxu0 0
        %287 = vmatprep.subr.bf16.mxu0 0
        %288 = vmatpush1.bf16.msra.mxu0 0
        %289 = vmatprep.subr.bf16.mxu0 0
        %290 = vmatpush1.bf16.msra.mxu0 0
        %291 = vmatprep.subr.bf16.mxu0 0
        %292 = vmatpush1.bf16.msra.mxu0 0
        %293 = vmatprep.subr.bf16.mxu0 0
        %294 = vmatpush1.bf16.msra.mxu0 0
        %295 = vmatprep.subr.bf16.mxu0 0
        %296 = vmatpush1.bf16.msra.mxu0 %v279
        %297 = vmatprep.subr.bf16.mxu0 0
        %298 = vmatpush2.bf16.msra.mxu0 0
        %299 = vmatprep.subr.bf16.mxu0 0
        %300 = vmatpush2.bf16.msra.mxu0 0
        %301 = vmatprep.subr.bf16.mxu0 0
        %302 = vmatpush2.bf16.msra.mxu0 0
        %303 = vmatprep.subr.bf16.mxu0 0
        %304 = vmatpush2.bf16.msra.mxu0 0
        %305 = vmatprep.subr.bf16.mxu0 0
        %306 = vmatpush2.bf16.msra.mxu0 0
        %307 = vmatprep.subr.bf16.mxu0 0
        %308 = vmatpush2.bf16.msra.mxu0 0
        %309 = vmatprep.subr.bf16.mxu0 0
        %310 = vmatpush2.bf16.msra.mxu0 0
        %311 = vmatprep.subr.bf16.mxu0 0
        %312 = vmatpush2.bf16.msra.mxu0 0
        %313 = vmatprep.mubr.bf16.mxu0 0
        %314 = vmatmul.mubr.bf16.gmra.mxu0 %v275
        %v315 = vpop.f32.mrf.mxu0
        %v316 = vadd.f32 0.0, %v315
        %v317 = vpop.f32.mrf.mxu0
        %v318 = vpop.f32.mrf.mxu0
        %v319 = vpop.f32.mrf.mxu0
        %320 = vdwg.mxu0
        %v321 = vlaneseq
        %v322 = vshrl.u32 %v321, 7
        %v323 = vsub.s32 0, %v322
        %v324 = vrot.slane %v269, %v323
        %v325 = vmul.f32 %v316, %v324
        %v326 = vadd.f32 %v325, 0.0
        %s327 = scalar_lea.vmem %s1, 4
        %v328 = vld [vmem:[%s327] sm:$0xf]
        %v330 = vunpack.c.l.b16 %v271
        %v331 = vpack.c.b16 %v330, %v330
        %332 = vrot.lane.b32.xlu0 %v331, 127
        %v333 = vpop.permute.xlu0 %332
        %v335 = vsel %vm273, %v328, 0
        %v338 = vsel %vm277, %v333, 0
        %340 = vmatprep.subr.bf16.mxu0 0
        %341 = vmatpush1.bf16.msra.mxu0 0
        %342 = vmatprep.subr.bf16.mxu0 0
        %343 = vmatpush1.bf16.msra.mxu0 0
        %344 = vmatprep.subr.bf16.mxu0 0
        %345 = vmatpush1.bf16.msra.mxu0 0
        %346 = vmatprep.subr.bf16.mxu0 0
        %347 = vmatpush1.bf16.msra.mxu0 0
        %348 = vmatprep.subr.bf16.mxu0 0
        %349 = vmatpush1.bf16.msra.mxu0 0
        %350 = vmatprep.subr.bf16.mxu0 0
        %351 = vmatpush1.bf16.msra.mxu0 0
        %352 = vmatprep.subr.bf16.mxu0 0
        %353 = vmatpush1.bf16.msra.mxu0 0
        %354 = vmatprep.subr.bf16.mxu0 0
        %355 = vmatpush1.bf16.msra.mxu0 %v338
        %356 = vmatprep.subr.bf16.mxu0 0
        %357 = vmatpush2.bf16.msra.mxu0 0
        %358 = vmatprep.subr.bf16.mxu0 0
        %359 = vmatpush2.bf16.msra.mxu0 0
        %360 = vmatprep.subr.bf16.mxu0 0
        %361 = vmatpush2.bf16.msra.mxu0 0
        %362 = vmatprep.subr.bf16.mxu0 0
        %363 = vmatpush2.bf16.msra.mxu0 0
        %364 = vmatprep.subr.bf16.mxu0 0
        %365 = vmatpush2.bf16.msra.mxu0 0
        %366 = vmatprep.subr.bf16.mxu0 0
        %367 = vmatpush2.bf16.msra.mxu0 0
        %368 = vmatprep.subr.bf16.mxu0 0
        %369 = vmatpush2.bf16.msra.mxu0 0
        %370 = vmatprep.subr.bf16.mxu0 0
        %371 = vmatpush2.bf16.msra.mxu0 0
        %372 = vmatprep.mubr.bf16.mxu0 0
        %373 = vmatmul.mubr.bf16.gmra.mxu0 %v335
        %v374 = vpop.f32.mrf.mxu0
        %v375 = vadd.f32 0.0, %v374
        %v376 = vpop.f32.mrf.mxu0
        %v377 = vpop.f32.mrf.mxu0
        %v378 = vpop.f32.mrf.mxu0
        %379 = vdwg.mxu0
        %v380 = vadd.f32 %v326, %v375
        %s381 = scalar_lea.vmem %s1, 8
        %v382 = vld [vmem:[%s381] sm:$0xf]
        %383 = vrot.lane.b32.xlu0 %v331, 126
        %v384 = vpop.permute.xlu0 %383
        %v386 = vsel %vm273, %v382, 0
        %v389 = vsel %vm277, %v384, 0
        %391 = vmatprep.subr.bf16.mxu0 0
        %392 = vmatpush1.bf16.msra.mxu0 0
        %393 = vmatprep.subr.bf16.mxu0 0
        %394 = vmatpush1.bf16.msra.mxu0 0
        %395 = vmatprep.subr.bf16.mxu0 0
        %396 = vmatpush1.bf16.msra.mxu0 0
        %397 = vmatprep.subr.bf16.mxu0 0
        %398 = vmatpush1.bf16.msra.mxu0 0
        %399 = vmatprep.subr.bf16.mxu0 0
        %400 = vmatpush1.bf16.msra.mxu0 0
        %401 = vmatprep.subr.bf16.mxu0 0
        %402 = vmatpush1.bf16.msra.mxu0 0
        %403 = vmatprep.subr.bf16.mxu0 0
        %404 = vmatpush1.bf16.msra.mxu0 0
        %405 = vmatprep.subr.bf16.mxu0 0
        %406 = vmatpush1.bf16.msra.mxu0 %v389
        %407 = vmatprep.subr.bf16.mxu0 0
        %408 = vmatpush2.bf16.msra.mxu0 0
        %409 = vmatprep.subr.bf16.mxu0 0
        %410 = vmatpush2.bf16.msra.mxu0 0
        %411 = vmatprep.subr.bf16.mxu0 0
        %412 = vmatpush2.bf16.msra.mxu0 0
        %413 = vmatprep.subr.bf16.mxu0 0
        %414 = vmatpush2.bf16.msra.mxu0 0
        %415 = vmatprep.subr.bf16.mxu0 0
        %416 = vmatpush2.bf16.msra.mxu0 0
        %417 = vmatprep.subr.bf16.mxu0 0
        %418 = vmatpush2.bf16.msra.mxu0 0
        %419 = vmatprep.subr.bf16.mxu0 0
        %420 = vmatpush2.bf16.msra.mxu0 0
        %421 = vmatprep.subr.bf16.mxu0 0
        %422 = vmatpush2.bf16.msra.mxu0 0
        %423 = vmatprep.mubr.bf16.mxu0 0
        %424 = vmatmul.mubr.bf16.gmra.mxu0 %v386
        %v425 = vpop.f32.mrf.mxu0
        %v426 = vadd.f32 0.0, %v425
        %v427 = vpop.f32.mrf.mxu0
        %v428 = vpop.f32.mrf.mxu0
        %v429 = vpop.f32.mrf.mxu0
        %430 = vdwg.mxu0
        %v431 = vlaneseq
        %v432 = vshrl.u32 %v431, 7
        %v433 = vsub.s32 0, %v432
        %v434 = vrot.slane %v270, %v433
        %v435 = vmul.f32 %v426, %v434
        %v436 = vadd.f32 %v380, %v435
        %s437 = scalar_lea.vmem %s1, 12
        %v438 = vld [vmem:[%s437] sm:$0xf]
        %439 = vrot.lane.b32.xlu0 %v331, 120
        %v440 = vpop.permute.xlu0 %439
        %v442 = vsel %vm273, %v438, 0
        %v445 = vsel %vm277, %v440, 0
        %447 = vmatprep.subr.bf16.mxu0 0
        %448 = vmatpush1.bf16.msra.mxu0 0
        %449 = vmatprep.subr.bf16.mxu0 0
        %450 = vmatpush1.bf16.msra.mxu0 0
        %451 = vmatprep.subr.bf16.mxu0 0
        %452 = vmatpush1.bf16.msra.mxu0 0
        %453 = vmatprep.subr.bf16.mxu0 0
        %454 = vmatpush1.bf16.msra.mxu0 0
        %455 = vmatprep.subr.bf16.mxu0 0
        %456 = vmatpush1.bf16.msra.mxu0 0
        %457 = vmatprep.subr.bf16.mxu0 0
        %458 = vmatpush1.bf16.msra.mxu0 0
        %459 = vmatprep.subr.bf16.mxu0 0
        %460 = vmatpush1.bf16.msra.mxu0 0
        %461 = vmatprep.subr.bf16.mxu0 0
        %462 = vmatpush1.bf16.msra.mxu0 %v445
        %463 = vmatprep.subr.bf16.mxu0 0
        %464 = vmatpush2.bf16.msra.mxu0 0
        %465 = vmatprep.subr.bf16.mxu0 0
        %466 = vmatpush2.bf16.msra.mxu0 0
        %467 = vmatprep.subr.bf16.mxu0 0
        %468 = vmatpush2.bf16.msra.mxu0 0
        %469 = vmatprep.subr.bf16.mxu0 0
        %470 = vmatpush2.bf16.msra.mxu0 0
        %471 = vmatprep.subr.bf16.mxu0 0
        %472 = vmatpush2.bf16.msra.mxu0 0
        %473 = vmatprep.subr.bf16.mxu0 0
        %474 = vmatpush2.bf16.msra.mxu0 0
        %475 = vmatprep.subr.bf16.mxu0 0
        %476 = vmatpush2.bf16.msra.mxu0 0
        %477 = vmatprep.subr.bf16.mxu0 0
        %478 = vmatpush2.bf16.msra.mxu0 0
        %479 = vmatprep.mubr.bf16.mxu0 0
        %480 = vmatmul.mubr.bf16.gmra.mxu0 %v442
        %v481 = vpop.f32.mrf.mxu0
        %v482 = vadd.f32 0.0, %v481
        %v483 = vpop.f32.mrf.mxu0
        %v484 = vpop.f32.mrf.mxu0
        %v485 = vpop.f32.mrf.mxu0
        %486 = vdwg.mxu0
        %v487 = vmul.f32 %v482, %v324
        %v488 = vadd.f32 %v436, %v487
        %s489 = scalar_lea.vmem %s1, 16
        %v490 = vld [vmem:[%s489] sm:$0xf]
        %491 = vrot.lane.b32.xlu0 %v331, 119
        %v492 = vpop.permute.xlu0 %491
        %v494 = vsel %vm273, %v490, 0
        %v497 = vsel %vm277, %v492, 0
        %499 = vmatprep.subr.bf16.mxu0 0
        %500 = vmatpush1.bf16.msra.mxu0 0
        %501 = vmatprep.subr.bf16.mxu0 0
        %502 = vmatpush1.bf16.msra.mxu0 0
        %503 = vmatprep.subr.bf16.mxu0 0
        %504 = vmatpush1.bf16.msra.mxu0 0
        %505 = vmatprep.subr.bf16.mxu0 0
        %506 = vmatpush1.bf16.msra.mxu0 0
        %507 = vmatprep.subr.bf16.mxu0 0
        %508 = vmatpush1.bf16.msra.mxu0 0
        %509 = vmatprep.subr.bf16.mxu0 0
        %510 = vmatpush1.bf16.msra.mxu0 0
        %511 = vmatprep.subr.bf16.mxu0 0
        %512 = vmatpush1.bf16.msra.mxu0 0
        %513 = vmatprep.subr.bf16.mxu0 0
        %514 = vmatpush1.bf16.msra.mxu0 %v497
        %515 = vmatprep.subr.bf16.mxu0 0
        %516 = vmatpush2.bf16.msra.mxu0 0
        %517 = vmatprep.subr.bf16.mxu0 0
        %518 = vmatpush2.bf16.msra.mxu0 0
        %519 = vmatprep.subr.bf16.mxu0 0
        %520 = vmatpush2.bf16.msra.mxu0 0
        %521 = vmatprep.subr.bf16.mxu0 0
        %522 = vmatpush2.bf16.msra.mxu0 0
        %523 = vmatprep.subr.bf16.mxu0 0
        %524 = vmatpush2.bf16.msra.mxu0 0
        %525 = vmatprep.subr.bf16.mxu0 0
        %526 = vmatpush2.bf16.msra.mxu0 0
        %527 = vmatprep.subr.bf16.mxu0 0
        %528 = vmatpush2.bf16.msra.mxu0 0
        %529 = vmatprep.subr.bf16.mxu0 0
        %530 = vmatpush2.bf16.msra.mxu0 0
        %531 = vmatprep.mubr.bf16.mxu0 0
        %532 = vmatmul.mubr.bf16.gmra.mxu0 %v494
        %v533 = vpop.f32.mrf.mxu0
        %v534 = vadd.f32 0.0, %v533
        %v535 = vpop.f32.mrf.mxu0
        %v536 = vpop.f32.mrf.mxu0
        %v537 = vpop.f32.mrf.mxu0
        %538 = vdwg.mxu0
        %v539 = vadd.f32 %v488, %v534
        %s540 = scalar_lea.vmem %s1, 20
        %v541 = vld [vmem:[%s540] sm:$0xf]
        %542 = vrot.lane.b32.xlu0 %v331, 118
        %v543 = vpop.permute.xlu0 %542
        %v545 = vsel %vm273, %v541, 0
        %v548 = vsel %vm277, %v543, 0
        %550 = vmatprep.subr.bf16.mxu0 0
        %551 = vmatpush1.bf16.msra.mxu0 0
        %552 = vmatprep.subr.bf16.mxu0 0
        %553 = vmatpush1.bf16.msra.mxu0 0
        %554 = vmatprep.subr.bf16.mxu0 0
        %555 = vmatpush1.bf16.msra.mxu0 0
        %556 = vmatprep.subr.bf16.mxu0 0
        %557 = vmatpush1.bf16.msra.mxu0 0
        %558 = vmatprep.subr.bf16.mxu0 0
        %559 = vmatpush1.bf16.msra.mxu0 0
        %560 = vmatprep.subr.bf16.mxu0 0
        %561 = vmatpush1.bf16.msra.mxu0 0
        %562 = vmatprep.subr.bf16.mxu0 0
        %563 = vmatpush1.bf16.msra.mxu0 0
        %564 = vmatprep.subr.bf16.mxu0 0
        %565 = vmatpush1.bf16.msra.mxu0 %v548
        %566 = vmatprep.subr.bf16.mxu0 0
        %567 = vmatpush2.bf16.msra.mxu0 0
        %568 = vmatprep.subr.bf16.mxu0 0
        %569 = vmatpush2.bf16.msra.mxu0 0
        %570 = vmatprep.subr.bf16.mxu0 0
        %571 = vmatpush2.bf16.msra.mxu0 0
        %572 = vmatprep.subr.bf16.mxu0 0
        %573 = vmatpush2.bf16.msra.mxu0 0
        %574 = vmatprep.subr.bf16.mxu0 0
        %575 = vmatpush2.bf16.msra.mxu0 0
        %576 = vmatprep.subr.bf16.mxu0 0
        %577 = vmatpush2.bf16.msra.mxu0 0
        %578 = vmatprep.subr.bf16.mxu0 0
        %579 = vmatpush2.bf16.msra.mxu0 0
        %580 = vmatprep.subr.bf16.mxu0 0
        %581 = vmatpush2.bf16.msra.mxu0 0
        %582 = vmatprep.mubr.bf16.mxu0 0
        %583 = vmatmul.mubr.bf16.gmra.mxu0 %v545
        %v584 = vpop.f32.mrf.mxu0
        %v585 = vadd.f32 0.0, %v584
        %v586 = vpop.f32.mrf.mxu0
        %v587 = vpop.f32.mrf.mxu0
        %v588 = vpop.f32.mrf.mxu0
        %589 = vdwg.mxu0
        %v590 = vmul.f32 %v585, %v434
        %v591 = vadd.f32 %v539, %v590
        %s592 = scalar_lea.vmem %s1, 24
        %v593 = vld [vmem:[%s592] sm:$0xf]
        %594 = vrot.lane.b32.xlu0 %v331, 112
        %v595 = vpop.permute.xlu0 %594
        %v597 = vsel %vm273, %v593, 0
        %v600 = vsel %vm277, %v595, 0
        %602 = vmatprep.subr.bf16.mxu0 0
        %603 = vmatpush1.bf16.msra.mxu0 0
        %604 = vmatprep.subr.bf16.mxu0 0
        %605 = vmatpush1.bf16.msra.mxu0 0
        %606 = vmatprep.subr.bf16.mxu0 0
        %607 = vmatpush1.bf16.msra.mxu0 0
        %608 = vmatprep.subr.bf16.mxu0 0
        %609 = vmatpush1.bf16.msra.mxu0 0
        %610 = vmatprep.subr.bf16.mxu0 0
        %611 = vmatpush1.bf16.msra.mxu0 0
        %612 = vmatprep.subr.bf16.mxu0 0
        %613 = vmatpush1.bf16.msra.mxu0 0
        %614 = vmatprep.subr.bf16.mxu0 0
        %615 = vmatpush1.bf16.msra.mxu0 0
        %616 = vmatprep.subr.bf16.mxu0 0
        %617 = vmatpush1.bf16.msra.mxu0 %v600
        %618 = vmatprep.subr.bf16.mxu0 0
        %619 = vmatpush2.bf16.msra.mxu0 0
        %620 = vmatprep.subr.bf16.mxu0 0
        %621 = vmatpush2.bf16.msra.mxu0 0
        %622 = vmatprep.subr.bf16.mxu0 0
        %623 = vmatpush2.bf16.msra.mxu0 0
        %624 = vmatprep.subr.bf16.mxu0 0
        %625 = vmatpush2.bf16.msra.mxu0 0
        %626 = vmatprep.subr.bf16.mxu0 0
        %627 = vmatpush2.bf16.msra.mxu0 0
        %628 = vmatprep.subr.bf16.mxu0 0
        %629 = vmatpush2.bf16.msra.mxu0 0
        %630 = vmatprep.subr.bf16.mxu0 0
        %631 = vmatpush2.bf16.msra.mxu0 0
        %632 = vmatprep.subr.bf16.mxu0 0
        %633 = vmatpush2.bf16.msra.mxu0 0
        %634 = vmatprep.mubr.bf16.mxu0 0
        %635 = vmatmul.mubr.bf16.gmra.mxu0 %v597
        %v636 = vpop.f32.mrf.mxu0
        %v637 = vadd.f32 0.0, %v636
        %v638 = vpop.f32.mrf.mxu0
        %v639 = vpop.f32.mrf.mxu0
        %v640 = vpop.f32.mrf.mxu0
        %641 = vdwg.mxu0
        %v642 = vmul.f32 %v637, %v324
        %v643 = vadd.f32 %v591, %v642
        %s644 = scalar_lea.vmem %s1, 28
        %v645 = vld [vmem:[%s644] sm:$0xf]
        %646 = vrot.lane.b32.xlu0 %v331, 111
        %v647 = vpop.permute.xlu0 %646
        %v649 = vsel %vm273, %v645, 0
        %v652 = vsel %vm277, %v647, 0
        %654 = vmatprep.subr.bf16.mxu0 0
        %655 = vmatpush1.bf16.msra.mxu0 0
        %656 = vmatprep.subr.bf16.mxu0 0
        %657 = vmatpush1.bf16.msra.mxu0 0
        %658 = vmatprep.subr.bf16.mxu0 0
        %659 = vmatpush1.bf16.msra.mxu0 0
        %660 = vmatprep.subr.bf16.mxu0 0
        %661 = vmatpush1.bf16.msra.mxu0 0
        %662 = vmatprep.subr.bf16.mxu0 0
        %663 = vmatpush1.bf16.msra.mxu0 0
        %664 = vmatprep.subr.bf16.mxu0 0
        %665 = vmatpush1.bf16.msra.mxu0 0
        %666 = vmatprep.subr.bf16.mxu0 0
        %667 = vmatpush1.bf16.msra.mxu0 0
        %668 = vmatprep.subr.bf16.mxu0 0
        %669 = vmatpush1.bf16.msra.mxu0 %v652
        %670 = vmatprep.subr.bf16.mxu0 0
        %671 = vmatpush2.bf16.msra.mxu0 0
        %672 = vmatprep.subr.bf16.mxu0 0
        %673 = vmatpush2.bf16.msra.mxu0 0
        %674 = vmatprep.subr.bf16.mxu0 0
        %675 = vmatpush2.bf16.msra.mxu0 0
        %676 = vmatprep.subr.bf16.mxu0 0
        %677 = vmatpush2.bf16.msra.mxu0 0
        %678 = vmatprep.subr.bf16.mxu0 0
        %679 = vmatpush2.bf16.msra.mxu0 0
        %680 = vmatprep.subr.bf16.mxu0 0
        %681 = vmatpush2.bf16.msra.mxu0 0
        %682 = vmatprep.subr.bf16.mxu0 0
        %683 = vmatpush2.bf16.msra.mxu0 0
        %684 = vmatprep.subr.bf16.mxu0 0
        %685 = vmatpush2.bf16.msra.mxu0 0
        %686 = vmatprep.mubr.bf16.mxu0 0
        %687 = vmatmul.mubr.bf16.gmra.mxu0 %v649
        %v688 = vpop.f32.mrf.mxu0
        %v689 = vadd.f32 0.0, %v688
        %v690 = vpop.f32.mrf.mxu0
        %v691 = vpop.f32.mrf.mxu0
        %v692 = vpop.f32.mrf.mxu0
        %693 = vdwg.mxu0
        %v694 = vadd.f32 %v643, %v689
        %s695 = scalar_lea.vmem %s1, 32
        %v696 = vld [vmem:[%s695] sm:$0xf]
        %697 = vrot.lane.b32.xlu0 %v331, 110
        %v698 = vpop.permute.xlu0 %697
        %v700 = vsel %vm273, %v696, 0
        %v703 = vsel %vm277, %v698, 0
        %705 = vmatprep.subr.bf16.mxu0 0
        %706 = vmatpush1.bf16.msra.mxu0 0
        %707 = vmatprep.subr.bf16.mxu0 0
        %708 = vmatpush1.bf16.msra.mxu0 0
        %709 = vmatprep.subr.bf16.mxu0 0
        %710 = vmatpush1.bf16.msra.mxu0 0
        %711 = vmatprep.subr.bf16.mxu0 0
        %712 = vmatpush1.bf16.msra.mxu0 0
        %713 = vmatprep.subr.bf16.mxu0 0
        %714 = vmatpush1.bf16.msra.mxu0 0
        %715 = vmatprep.subr.bf16.mxu0 0
        %716 = vmatpush1.bf16.msra.mxu0 0
        %717 = vmatprep.subr.bf16.mxu0 0
        %718 = vmatpush1.bf16.msra.mxu0 0
        %719 = vmatprep.subr.bf16.mxu0 0
        %720 = vmatpush1.bf16.msra.mxu0 %v703
        %721 = vmatprep.subr.bf16.mxu0 0
        %722 = vmatpush2.bf16.msra.mxu0 0
        %723 = vmatprep.subr.bf16.mxu0 0
        %724 = vmatpush2.bf16.msra.mxu0 0
        %725 = vmatprep.subr.bf16.mxu0 0
        %726 = vmatpush2.bf16.msra.mxu0 0
        %727 = vmatprep.subr.bf16.mxu0 0
        %728 = vmatpush2.bf16.msra.mxu0 0
        %729 = vmatprep.subr.bf16.mxu0 0
        %730 = vmatpush2.bf16.msra.mxu0 0
        %731 = vmatprep.subr.bf16.mxu0 0
        %732 = vmatpush2.bf16.msra.mxu0 0
        %733 = vmatprep.subr.bf16.mxu0 0
        %734 = vmatpush2.bf16.msra.mxu0 0
        %735 = vmatprep.subr.bf16.mxu0 0
        %736 = vmatpush2.bf16.msra.mxu0 0
        %737 = vmatprep.mubr.bf16.mxu0 0
        %738 = vmatmul.mubr.bf16.gmra.mxu0 %v700
        %v739 = vpop.f32.mrf.mxu0
        %v740 = vadd.f32 0.0, %v739
        %v741 = vpop.f32.mrf.mxu0
        %v742 = vpop.f32.mrf.mxu0
        %v743 = vpop.f32.mrf.mxu0
        %744 = vdwg.mxu0
        %v745 = vmul.f32 %v740, %v434
        %v746 = vadd.f32 %v694, %v745
        %s747 = smul.u32 %s21, 8
        %s748 = scalar_lea.vmem [#allocation2], %s747
        %vm749 = vcmask 523264
        %750 = vst.msk [vmem:[%s748] sm:$0xff] %vm749, %v746
        %v751 = vld [vmem:[#allocation3] sm:$0xff]
        %v752 = vsel %vm749, %v746, 0.0
        %753 = vadd.xlane.f32.xlu0 %v752
        %v754 = vpop.xlane.xlu0 %753
        %v755 = vadd.f32 %v751, %v754
        %vm756 = vcmask 7168
        %757 = vst.msk [vmem:[#allocation3] sm:$0xff] %vm756, %v755
      $region44: #{down_block_forward.3} parent=39 // pred_fallthru
        _
      %p758 = scmp.eq.s32.totalorder %s20, 1
      %p759 = scmp.eq.s32.totalorder %s21, 0
      %p760 = pnand %p758, %p759
      %p761 = pneg %p760
      // Predicated region
      $region49: #{down_block_forward.3} parent=39 // pred_check
        _
      $region50: #{down_block_forward.3} parent=39 // pred_check_branch
        %763 = sbr.rel (%p760) target = $region52
      $region51: #{down_block_forward.3} parent=39 // pred_region
        %v764 = vld [vmem:[#allocation3] sm:$0xff]
        %v765 = vmul.f32 %v764, 0.0078125
        loop: start=0, step=1, limit=2
        $region53: #{down_block_forward.3} parent=51 // loop_pre_header
          _
        $region54: #{down_block_forward.3} parent=51 // loop_header
          %s767 = sphi 0, %s771
          %p768 = scmp.ge.s32.totalorder %s767, 2
          %v772 = vphi 0.0, %v787
        $region55: #{down_block_forward.3} parent=51 // loop_header_branch
          %770 = sbr.rel (%p768) target = $region59
        $region56: #{down_block_forward.3} parent=51 // loop_body
          %s773 = smul.u32 %s767, 8
          %s774 = scalar_lea.vmem [#allocation2], %s773
          %v775 = vld [vmem:[%s774] sm:$0xff]
          %777 = vset.pattern.permute.xlu0 0
          %778 = vperm.xlu0 %777, %v765
          %v779 = vpop.permute.xlu0 %778
          %v781 = vsub.f32 %v775, %v779
          %v782 = vmul.f32 %v781, %v781
          %vm783 = vcmask 523264
          %v784 = vsel %vm783, %v782, 0.0
          %785 = vadd.xlane.f32.xlu0 %v784
          %v786 = vpop.xlane.xlu0 %785
          %v787 = vadd.f32 %v772, %v786
        $region57: #{down_block_forward.3} parent=51 // loop_footer
          %s771 = sadd.s32 1, %s767
        $region58: #{down_block_forward.3} parent=51 // loop_footer_branch
          %766 = sbr.rel target = $region54
        $region59: #{down_block_forward.3} parent=51 // loop_exit
          _
        %v788 = vmul.f32 %v772, 0.0078125
        %v789 = vld [vmem:[%s3] sm:$0xff]
        %v790 = vadd.f32 %v788, 1e-05
        %v791 = vrsqrt.pop %v790
        %v792 = vmul.f32 %v789, %v791
        %vm793 = vcmask 7168
        %794 = vst.msk [vmem:[#allocation4] sm:$0xff] %vm793, %v792
        %v795 = vld [vmem:[%s4] sm:$0xff]
        %v796 = vmul.f32 %v765, %v792
        %v797 = vsub.f32 %v795, %v796
        %798 = vst.msk [vmem:[#allocation5] sm:$0xff] %vm793, %v797
      $region52: #{down_block_forward.3} parent=39 // pred_fallthru
        _
      // Predicated region
      $region60: #{down_block_forward.3} parent=39 // pred_check
        %p799 = pneg %p758
      $region61: #{down_block_forward.3} parent=39 // pred_check_branch
        %801 = sbr.rel (%p799) target = $region63
      $region62: #{down_block_forward.3} parent=39 // pred_region
        %s802 = smul.u32 %s21, 8
        %s803 = scalar_lea.vmem [#allocation2], %s802
        %v804 = vld [vmem:[%s803] sm:$0xff]
        %v805 = vld [vmem:[#allocation4] sm:$0xff]
        %807 = vset.pattern.permute.xlu0 0
        %808 = vperm.xlu0 %807, %v805
        %v809 = vpop.permute.xlu0 %808
        %v811 = vmul.f32 %v804, %v809
        %v812 = vld [vmem:[#allocation5] sm:$0xff]
        %814 = vset.pattern.permute.xlu0 0
        %815 = vperm.xlu0 %814, %v812
        %v816 = vpop.permute.xlu0 %815
        %v818 = vadd.f32 %v811, %v816
        %v819 = vmax.f32 %v818, 0.0
        %vm820 = vcmask 523264
        %821 = vst.msk [vmem:[%s256] sm:$0xff] %vm820, %v819
      $region63: #{down_block_forward.3} parent=39 // pred_fallthru
        _
      %s822 = smul.u32 %s20, %s21
      %p823 = scmp.lt.s32.totalorder %s822, 1
      %s824 = scalar_select %p823, %s822, 1
      %s825 = smul.addr %s824, 8
      %s826 = scalar_lea.vmem %s5, %s825
      // Predicated region
      $region64: #{down_block_forward.3} parent=39 // pred_check
        %p827 = pneg %p164
      $region65: #{down_block_forward.3} parent=39 // pred_check_branch
        %829 = sbr.rel (%p827) target = $region67
      $region66: #{down_block_forward.3} parent=39 // pred_region
        %s830 = smul.u32 %s20, %s21
      $region67: #{down_block_forward.3} parent=39 // pred_fallthru
        _
    $region40: #{down_block_forward.3} parent=5 // pred_fallthru
      _
    %p831 = scmp.le.s32.totalorder 2, %s11
    // Predicated region
    $region68: #{down_block_forward.3} parent=5 // pred_check
      %p832 = pneg %p831
    $region69: #{down_block_forward.3} parent=5 // pred_check_branch
      %834 = sbr.rel (%p832) target = $region71
    $region70: #{down_block_forward.3} parent=5 // pred_region
      %s835 = ssub.s32 %s11, 2
      // Predicated region
      $region72: #{down_block_forward.3} parent=70 // pred_check
        %p836 = pneg %p170
      $region73: #{down_block_forward.3} parent=70 // pred_check_branch
        %838 = sbr.rel (%p836) target = $region75
      $region74: #{down_block_forward.3} parent=70 // pred_region
        %s839 = smul.u32 %s22, %s23
        %p840 = scmp.lt.s32.totalorder %s839, 1
        %s841 = scalar_select %p840, %s839, 1
        %s842 = smul.addr %s841, 8
        %s843 = scalar_lea.vmem %s5, %s842
      $region75: #{down_block_forward.3} parent=70 // pred_fallthru
        _
    $region71: #{down_block_forward.3} parent=5 // pred_fallthru
      _
  $region6: #{down_block_forward.3} parent=0 // loop_footer
    %s15 = sadd.s32 1, %s11
  $region7: #{down_block_forward.3} parent=0 // loop_footer_branch
    %10 = sbr.rel target = $region3
  $region8: #{down_block_forward.3} parent=0 // loop_exit
    _

</llo_original>
